<compile_context>
chip_gen: v7x
topology: tpu7x:2x2x1
jax: 0.10.0
libtpu: 0.0.40
codegen_flags: <defaults>
</compile_context>

<pallas_src>
import functools

import jax
import jax.numpy as jnp
import numpy as np
from jax import lax
from jax.experimental import pallas as pl
from jax.experimental.pallas import tpu as pltpu


# ---------------------------------------------------------------------------
# Pallas kernel: grid = (B, HW // tile_hw)
# ---------------------------------------------------------------------------
def _pp_encoder_kernel(cls_ids_ref,                 # scalar prefetch (SMEM), (B,)
                       feat_ref,                    # (1, TH, C)
                       protos_t_ref,                # (C, K)
                       w1d_ref, b1d_ref,            # (C, Hd), (1, Hd)
                       w2d_ref, b2d_ref,            # (Hd, C), (1, C)
                       w1s_ref,                     # (Hs, TH)   (HW-tile of w1s)
                       b1s_ref,                     # (Hs, 1)
                       w2s_ref,                     # (T, Hs)
                       pos_ref, neg_ref,            # (T, K*C)   (fc2 bias folded in)
                       gated_out_ref,               # (1, TH, C)
                       dense_out_ref,               # (1, TH, C)
                       sparse_out_ref,              # (1, T, K*C)
                       acc_ref,                     # (Hs, K*C) f32 scratch
                       *, mxu_dtype):
    b = pl.program_id(0)
    t = pl.program_id(1)
    n_t = pl.num_programs(1)

    C, K = protos_t_ref.shape
    T, KC = pos_ref.shape

    sel = cls_ids_ref[b] - 1                          # selected class (0-based scalar)

    f = feat_ref[0]                                   # (TH, C) f32
    f_mx = f.astype(mxu_dtype)

    # --- similarities against all prototypes: one MXU matmul -> (TH, K) ---
    sim = jnp.dot(f_mx, protos_t_ref[...].astype(mxu_dtype),
                  preferred_element_type=jnp.float32)

    # --- init the sparse-fc1 accumulator at the first HW tile of this batch ---
    @pl.when(t == 0)
    def _init():
        acc_ref[...] = jnp.zeros_like(acc_ref)

    # --- sparse fc1 partial sums for all K classes on this HW tile ---------
    # h_s[:, k*C:(k+1)*C] += w1s_tile @ (f + f*sim[:, k])     (no (HW,K*C) slab)
    w1s_mx = w1s_ref[...].astype(mxu_dtype)                       # (Hs, TH)
    partials = []
    for k in range(K):                                            # K is static
        g_k = f + f * sim[:, k:k + 1]                             # (TH, C) f32
        partials.append(jnp.dot(w1s_mx, g_k.astype(mxu_dtype),
                                preferred_element_type=jnp.float32))
    acc_ref[...] += jnp.concatenate(partials, axis=-1)            # (Hs, K*C)

    # --- gated features (selected class) + dense branch for this HW tile ---
    k_iota = lax.broadcasted_iota(jnp.int32, (1, K), 1)           # (1, K)
    sim_sel = jnp.sum(jnp.where(k_iota == sel, sim, 0.0),
                      axis=1, keepdims=True)                      # (TH, 1)
    g_sel = f + f * sim_sel                                       # (TH, C)
    gated_out_ref[0] = g_sel

    h_d = jnp.maximum(
        jnp.dot(g_sel.astype(mxu_dtype), w1d_ref[...].astype(mxu_dtype),
                preferred_element_type=jnp.float32) + b1d_ref[...], 0.0)
    dense_out_ref[0] = (
        jnp.dot(h_d.astype(mxu_dtype), w2d_ref[...].astype(mxu_dtype),
                preferred_element_type=jnp.float32) + b2d_ref[...])

    # --- finalize the sparse branch after the last HW tile ------------------
    @pl.when(t == n_t - 1)
    def _finalize():
        h_s = jnp.maximum(acc_ref[...] + b1s_ref[...], 0.0)       # (Hs, K*C)
        sp = jnp.dot(w2s_ref[...].astype(mxu_dtype), h_s.astype(mxu_dtype),
                     preferred_element_type=jnp.float32)          # (T, K*C)
        # pos embedding on the selected class's column block, neg elsewhere
        lane = lax.broadcasted_iota(jnp.int32, (T, KC), 1)
        in_sel = (lane >= sel * C) & (lane < (sel + 1) * C)
        sparse_out_ref[0] = sp + jnp.where(in_sel, pos_ref[...], neg_ref[...])


# ---------------------------------------------------------------------------
# Wrapper
# ---------------------------------------------------------------------------
def prototype_prompt_encoder(feat, prototypes, cls_ids, params, *,
                             feat_size, num_classes, num_tokens,
                             tile_hw=None, mxu_dtype=jnp.float32,
                             vmem_limit_bytes=None):
    B, HW, C = feat.shape
    K, T = num_classes, num_tokens
    KC = K * C
    Hd = params["w1d"].shape[0]      # hidden_dim_dense
    Hs = params["w1s"].shape[0]      # hidden_dim_sparse

    if tile_hw is None:
        tile_hw = HW if HW <= 512 else 512
    assert HW % tile_hw == 0 and tile_hw % 8 == 0, (HW, tile_hw)
    n_t = HW // tile_hw

    f32 = jnp.float32
    # Parameter-sized, lane-friendly rearrangements (done once in the wrapper).
    protos_t = prototypes.T.astype(f32)                            # (C, K)
    w1d_t = params["w1d"].T.astype(f32)                            # (C, Hd)
    b1d = params["b1d"].reshape(1, Hd).astype(f32)
    w2d_t = params["w2d"].T.astype(f32)                            # (Hd, C)
    b2d = params["b2d"].reshape(1, C).astype(f32)
    w1s = params["w1s"].astype(f32)                                # (Hs, HW)
    b1s = params["b1s"].reshape(Hs, 1).astype(f32)                 # (Hs, 1)
    w2s = params["w2s"].astype(f32)                                # (T, Hs)
    b2s_bc = jnp.broadcast_to(params["b2s"].reshape(T, 1), (T, KC)).astype(f32)
    pos_full = jnp.tile(params["pos_embed"].astype(f32), (1, K)) + b2s_bc   # (T, KC)
    neg_full = jnp.tile(params["neg_embed"].astype(f32), (1, K)) + b2s_bc   # (T, KC)

    def const(shape):
        nd = len(shape)
        return pl.BlockSpec(shape, lambda b, t, ids, nd=nd: (0,) * nd)

    grid_spec = pltpu.PrefetchScalarGridSpec(
        num_scalar_prefetch=1,
        grid=(B, n_t),
        in_specs=[
            pl.BlockSpec((1, tile_hw, C), lambda b, t, ids: (b, t, 0)),   # feat tile
            const((C, K)),                                                # prototypes^T
            const((C, Hd)), const((1, Hd)),                               # dense fc1
            const((Hd, C)), const((1, C)),                                # dense fc2
            pl.BlockSpec((Hs, tile_hw), lambda b, t, ids: (0, t)),        # sparse fc1 tile
            const((Hs, 1)),                                               # sparse fc1 bias
            const((T, Hs)),                                               # sparse fc2
            const((T, KC)), const((T, KC)),                               # pos/neg (+bias)
        ],
        out_specs=[
            pl.BlockSpec((1, tile_hw, C), lambda b, t, ids: (b, t, 0)),   # gated (selected)
            pl.BlockSpec((1, tile_hw, C), lambda b, t, ids: (b, t, 0)),   # dense
            pl.BlockSpec((1, T, KC), lambda b, t, ids: (b, 0, 0)),        # sparse slab
        ],
        scratch_shapes=[pltpu.VMEM((Hs, KC), jnp.float32)],               # fc1 accumulator
    )

    cp_kwargs = dict(dimension_semantics=("parallel", "arbitrary"))
    if vmem_limit_bytes is not None:
        cp_kwargs["vmem_limit_bytes"] = vmem_limit_bytes

    out_shapes = (
        jax.ShapeDtypeStruct((B, HW, C), f32),
        jax.ShapeDtypeStruct((B, HW, C), f32),
        jax.ShapeDtypeStruct((B, T, KC), f32),
    )

    gated, dense, sparse_raw = pl.pallas_call(
        functools.partial(_pp_encoder_kernel, mxu_dtype=mxu_dtype),
        grid_spec=grid_spec,
        out_shape=out_shapes,
        compiler_params=pltpu.CompilerParams(**cp_kwargs),
    )(cls_ids.astype(jnp.int32), feat.astype(f32), protos_t,
      w1d_t, b1d, w2d_t, b2d,
      w1s, b1s, w2s, pos_full, neg_full)

    fs = feat_size
    # TODO(synk): for C % 128 == 0 deployments, emit (1, C, tile_hw) NCHW blocks
    # from the kernel instead of these two XLA transposes.
    feat_nchw = gated.reshape(B, fs, fs, C).transpose(0, 3, 1, 2)      # (B, C, H, W)
    dense_nchw = dense.reshape(B, fs, fs, C).transpose(0, 3, 1, 2)     # (B, C, H, W)
    sparse = (sparse_raw.reshape(B, T, K, C)
              .transpose(0, 2, 1, 3)
              .reshape(B, K * T, C))                                   # (B, K*T, C)
    return feat_nchw, dense_nchw, sparse


# ---------------------------------------------------------------------------
# Pure-JAX reference (mirrors the PyTorch forward) for correctness checking.
# ---------------------------------------------------------------------------
def reference(feat, prototypes, cls_ids, params, *, feat_size, num_classes, num_tokens):
    B, HW, C = feat.shape
    K, T = num_classes, num_tokens
    P = jax.lax.Precision.HIGHEST
    featK = jnp.broadcast_to(feat[:, None], (B, K, HW, C))
    sim = jnp.einsum("bkhc,kc->bkh", featK, prototypes, precision=P)[..., None]
    g = featK + featK * sim
    one_hot = jax.nn.one_hot(cls_ids - 1, K, dtype=jnp.float32)

    sel = g[jnp.arange(B), cls_ids - 1]                               # (B, HW, C)
    feat_nchw = sel.reshape(B, feat_size, feat_size, C).transpose(0, 3, 1, 2)

    hd = jax.nn.relu(jnp.einsum("bhc,dc->bhd", sel, params["w1d"], precision=P)
                     + params["b1d"])
    dense = jnp.einsum("bhd,cd->bhc", hd, params["w2d"], precision=P) + params["b2d"]
    dense_nchw = dense.reshape(B, feat_size, feat_size, C).transpose(0, 3, 1, 2)

    gs = g.reshape(B * K, HW, C)
    hs = jax.nn.relu(jnp.einsum("sh,nhc->nsc", params["w1s"], gs, precision=P)
                     + params["b1s"][None, :, None])
    sp = (jnp.einsum("ts,nsc->ntc", params["w2s"], hs, precision=P)
          + params["b2s"][None, :, None]).reshape(B, K, T, C)
    pos = params["pos_embed"][None, None] * one_hot[:, :, None, None]
    neg = params["neg_embed"][None, None] * (1.0 - one_hot)[:, :, None, None]
    sp = sp + pos + neg
    return feat_nchw, dense_nchw, sp.reshape(B, K * T, C)


if __name__ == "__main__":
    # Small shapes, chosen so the kernel exercises multi-tile HW accumulation
    # (HW = 256, tile_hw = 128 -> 2 tiles) and a lane-dense sparse slab
    # (K*C = 128).  cls_ids must lie in [1, num_classes].
    feat_dim = 32          # C
    hidden_dense = 16
    hidden_sparse = 16
    feat_size = 16         # H = W = 16  -> HW = 256
    num_tokens = 8
    num_classes = 4
    B = 2
    HW = feat_size * feat_size

    key = jax.random.PRNGKey(0)
    ks = jax.random.split(key, 12)

    feat = jax.random.normal(ks[0], (B, HW, feat_dim), jnp.float32)
    prototypes = jax.random.normal(ks[1], (num_classes, feat_dim), jnp.float32) * 0.1
    cls_ids = jnp.array([2, 4], dtype=jnp.int32)   # values in [1, num_classes]

    params = {
        # Conv2d(feat_dim -> hidden_dense, 1x1) squeezed to a matrix
        "w1d": jax.random.normal(ks[2], (hidden_dense, feat_dim), jnp.float32) * 0.05,
        "b1d": jax.random.normal(ks[3], (hidden_dense,), jnp.float32) * 0.01,
        # Conv2d(hidden_dense -> feat_dim, 1x1)
        "w2d": jax.random.normal(ks[4], (feat_dim, hidden_dense), jnp.float32) * 0.05,
        "b2d": jax.random.normal(ks[5], (feat_dim,), jnp.float32) * 0.01,
        # Conv1d(HW -> hidden_sparse, kernel 1)
        "w1s": jax.random.normal(ks[6], (hidden_sparse, HW), jnp.float32) * 0.05,
        "b1s": jax.random.normal(ks[7], (hidden_sparse,), jnp.float32) * 0.01,
        # Conv1d(hidden_sparse -> num_tokens, kernel 1)
        "w2s": jax.random.normal(ks[8], (num_tokens, hidden_sparse), jnp.float32) * 0.05,
        "b2s": jax.random.normal(ks[9], (num_tokens,), jnp.float32) * 0.01,
        # pn_cls_embeddings[0] (neg) and [1] (pos)
        "neg_embed": jax.random.normal(ks[10], (num_tokens, feat_dim), jnp.float32) * 0.1,
        "pos_embed": jax.random.normal(ks[11], (num_tokens, feat_dim), jnp.float32) * 0.1,
    }

    run = functools.partial(prototype_prompt_encoder,
                            feat_size=feat_size,
                            num_classes=num_classes,
                            num_tokens=num_tokens,
                            tile_hw=128)

    feat_ref, dense_ref, sparse_ref = reference(
        feat, prototypes, cls_ids, params,
        feat_size=feat_size, num_classes=num_classes, num_tokens=num_tokens)

    # --- f32 MXU operands (default): tight tolerance --------------------------
    feat_out, dense_out, sparse_out = run(feat, prototypes, cls_ids, params)
    jax.block_until_ready((feat_out, dense_out, sparse_out))
    np.testing.assert_allclose(np.asarray(feat_out), np.asarray(feat_ref),
                               rtol=2e-3, atol=2e-3)
    np.testing.assert_allclose(np.asarray(dense_out), np.asarray(dense_ref),
                               rtol=2e-3, atol=2e-3)
    np.testing.assert_allclose(np.asarray(sparse_out), np.asarray(sparse_ref),
                               rtol=2e-3, atol=2e-3)

    # --- bf16 MXU operands (production setting on v6e/v7x): loose tolerance ---
    feat_bf, dense_bf, sparse_bf = run(feat, prototypes, cls_ids, params,
                                       mxu_dtype=jnp.bfloat16)
    jax.block_until_ready((feat_bf, dense_bf, sparse_bf))
    np.testing.assert_allclose(np.asarray(feat_bf), np.asarray(feat_ref),
                               rtol=5e-2, atol=5e-2)
    np.testing.assert_allclose(np.asarray(dense_bf), np.asarray(dense_ref),
                               rtol=5e-2, atol=5e-2)
    np.testing.assert_allclose(np.asarray(sparse_bf), np.asarray(sparse_ref),
                               rtol=5e-2, atol=5e-2)

    print("KERNEL_OK")
</pallas_src>

<mosaic_0001>
module attributes {stable_mosaic.version = 11 : i64} {
  func.func @_pp_encoder_kernel(%arg0: i32, %arg1: i32, %arg2: memref<2xi32, #tpu.memory_space<smem>>, %arg3: memref<1x128x32xf32, #tpu.memory_space<vmem>>, %arg4: memref<32x4xf32, #tpu.memory_space<vmem>>, %arg5: memref<32x16xf32, #tpu.memory_space<vmem>>, %arg6: memref<1x16xf32, #tpu.memory_space<vmem>>, %arg7: memref<16x32xf32, #tpu.memory_space<vmem>>, %arg8: memref<1x32xf32, #tpu.memory_space<vmem>>, %arg9: memref<16x128xf32, #tpu.memory_space<vmem>>, %arg10: memref<16x1xf32, #tpu.memory_space<vmem>>, %arg11: memref<8x16xf32, #tpu.memory_space<vmem>>, %arg12: memref<8x128xf32, #tpu.memory_space<vmem>>, %arg13: memref<8x128xf32, #tpu.memory_space<vmem>>, %arg14: memref<1x128x32xf32, #tpu.memory_space<vmem>>, %arg15: memref<1x128x32xf32, #tpu.memory_space<vmem>>, %arg16: memref<1x8x128xf32, #tpu.memory_space<vmem>>, %arg17: memref<16x128xf32, #tpu.memory_space<vmem>>) attributes {dimension_semantics = [#tpu.dimension_semantics<parallel>, #tpu.dimension_semantics<arbitrary>], iteration_bounds = array<i64: 2, 2>, scalar_prefetch = 1 : i64, scratch_operands = 1 : i64, tpu.core_type = #tpu.core_type<tc>, window_params = [{transform_indices = @transform_0, window_bounds = array<i64: 1, 128, 32>}, {pipeline_mode = #tpu.pipeline_mode<synchronous>, transform_indices = @transform_1, window_bounds = array<i64: 32, 4>}, {pipeline_mode = #tpu.pipeline_mode<synchronous>, transform_indices = @transform_2, window_bounds = array<i64: 32, 16>}, {pipeline_mode = #tpu.pipeline_mode<synchronous>, transform_indices = @transform_3, window_bounds = array<i64: 1, 16>}, {pipeline_mode = #tpu.pipeline_mode<synchronous>, transform_indices = @transform_4, window_bounds = array<i64: 16, 32>}, {pipeline_mode = #tpu.pipeline_mode<synchronous>, transform_indices = @transform_5, window_bounds = array<i64: 1, 32>}, {transform_indices = @transform_6, window_bounds = array<i64: 16, 128>}, {pipeline_mode = #tpu.pipeline_mode<synchronous>, transform_indices = @transform_7, window_bounds = array<i64: 16, 1>}, {pipeline_mode = #tpu.pipeline_mode<synchronous>, transform_indices = @transform_8, window_bounds = array<i64: 8, 16>}, {pipeline_mode = #tpu.pipeline_mode<synchronous>, transform_indices = @transform_9, window_bounds = array<i64: 8, 128>}, {pipeline_mode = #tpu.pipeline_mode<synchronous>, transform_indices = @transform_10, window_bounds = array<i64: 8, 128>}, {transform_indices = @transform_11, window_bounds = array<i64: 1, 128, 32>}, {transform_indices = @transform_12, window_bounds = array<i64: 1, 128, 32>}, {transform_indices = @transform_13, window_bounds = array<i64: 1, 8, 128>}]} {
    %0 = arith.index_cast %arg0 : i32 to index
    %1 = memref.load %arg2[%0] : memref<2xi32, #tpu.memory_space<smem>>
    %c1_i32 = arith.constant 1 : i32
    %2 = arith.subi %1, %c1_i32 : i32
    %c0 = arith.constant 0 : index
    %c0_0 = arith.constant 0 : index
    %c0_1 = arith.constant 0 : index
    %3 = vector.load %arg3[%c0, %c0_0, %c0_1] : memref<1x128x32xf32, #tpu.memory_space<vmem>>, vector<1x128x32xf32>
    %4 = vector.shape_cast %3 : vector<1x128x32xf32> to vector<128x32xf32>
    %c0_2 = arith.constant 0 : index
    %c0_3 = arith.constant 0 : index
    %5 = vector.load %arg4[%c0_2, %c0_3] : memref<32x4xf32, #tpu.memory_space<vmem>>, vector<32x4xf32>
    %cst = arith.constant dense<0.000000e+00> : vector<128x4xf32>
    %6 = tpu.matmul %4, %5, %cst {dimension_numbers = #tpu.dot_dimension_numbers<[1], [0], [0], [1], [0, 0, 1, 1], [], []>} : vector<128x32xf32>, vector<32x4xf32>, vector<128x4xf32> -> vector<128x4xf32>
    %c0_i32 = arith.constant 0 : i32
    %7 = arith.cmpi eq, %arg1, %c0_i32 : i32
    %8 = arith.extui %7 : i1 to i32
    %c0_i32_4 = arith.constant 0 : i32
    %9 = arith.cmpi ne, %8, %c0_i32_4 : i32
    scf.if %9 {
      %cst_36 = arith.constant 0.000000e+00 : f32
      %68 = vector.broadcast %cst_36 : f32 to vector<16x128xf32>
      %c0_37 = arith.constant 0 : index
      %c0_38 = arith.constant 0 : index
      %69 = vector.load %arg17[%c0_37, %c0_38] : memref<16x128xf32, #tpu.memory_space<vmem>>, vector<16x128xf32>
      tpu.vector_store %arg17[%c0_37, %c0_38], %68 {strides = array<i32>} : memref<16x128xf32, #tpu.memory_space<vmem>>, vector<16x128xf32>,
    } else {
    }
    %c0_5 = arith.constant 0 : index
    %c0_6 = arith.constant 0 : index
    %10 = vector.load %arg9[%c0_5, %c0_6] : memref<16x128xf32, #tpu.memory_space<vmem>>, vector<16x128xf32>
    %11 = vector.extract_strided_slice %6 {offsets = [0, 0], sizes = [128, 1], strides = [1, 1]} : vector<128x4xf32> to vector<128x1xf32>
    %12 = vector.broadcast %11 : vector<128x1xf32> to vector<128x32xf32>
    %13 = arith.mulf %4, %12 : vector<128x32xf32>
    %14 = arith.addf %4, %13 : vector<128x32xf32>
    %cst_7 = arith.constant dense<0.000000e+00> : vector<16x32xf32>
    %15 = tpu.matmul %10, %14, %cst_7 {dimension_numbers = #tpu.dot_dimension_numbers<[1], [0], [0], [1], [0, 0, 1, 1], [], []>} : vector<16x128xf32>, vector<128x32xf32>, vector<16x32xf32> -> vector<16x32xf32>
    %16 = vector.extract_strided_slice %6 {offsets = [0, 1], sizes = [128, 1], strides = [1, 1]} : vector<128x4xf32> to vector<128x1xf32>
    %17 = vector.broadcast %16 : vector<128x1xf32> to vector<128x32xf32>
    %18 = arith.mulf %4, %17 : vector<128x32xf32>
    %19 = arith.addf %4, %18 : vector<128x32xf32>
    %cst_8 = arith.constant dense<0.000000e+00> : vector<16x32xf32>
    %20 = tpu.matmul %10, %19, %cst_8 {dimension_numbers = #tpu.dot_dimension_numbers<[1], [0], [0], [1], [0, 0, 1, 1], [], []>} : vector<16x128xf32>, vector<128x32xf32>, vector<16x32xf32> -> vector<16x32xf32>
    %21 = vector.extract_strided_slice %6 {offsets = [0, 2], sizes = [128, 1], strides = [1, 1]} : vector<128x4xf32> to vector<128x1xf32>
    %22 = vector.broadcast %21 : vector<128x1xf32> to vector<128x32xf32>
    %23 = arith.mulf %4, %22 : vector<128x32xf32>
    %24 = arith.addf %4, %23 : vector<128x32xf32>
    %cst_9 = arith.constant dense<0.000000e+00> : vector<16x32xf32>
    %25 = tpu.matmul %10, %24, %cst_9 {dimension_numbers = #tpu.dot_dimension_numbers<[1], [0], [0], [1], [0, 0, 1, 1], [], []>} : vector<16x128xf32>, vector<128x32xf32>, vector<16x32xf32> -> vector<16x32xf32>
    %26 = vector.extract_strided_slice %6 {offsets = [0, 3], sizes = [128, 1], strides = [1, 1]} : vector<128x4xf32> to vector<128x1xf32>
    %27 = vector.broadcast %26 : vector<128x1xf32> to vector<128x32xf32>
    %28 = arith.mulf %4, %27 : vector<128x32xf32>
    %29 = arith.addf %4, %28 : vector<128x32xf32>
    %cst_10 = arith.constant dense<0.000000e+00> : vector<16x32xf32>
    %30 = tpu.matmul %10, %29, %cst_10 {dimension_numbers = #tpu.dot_dimension_numbers<[1], [0], [0], [1], [0, 0, 1, 1], [], []>} : vector<16x128xf32>, vector<128x32xf32>, vector<16x32xf32> -> vector<16x32xf32>
    %c0_11 = arith.constant 0 : index
    %c0_12 = arith.constant 0 : index
    %31 = vector.load %arg17[%c0_11, %c0_12] : memref<16x128xf32, #tpu.memory_space<vmem>>, vector<16x128xf32>
    %32 = tpu.concatenate %15, %20, %25, %30 in 1 : vector<16x32xf32>, vector<16x32xf32>, vector<16x32xf32>, vector<16x32xf32> -> vector<16x128xf32>
    %33 = arith.addf %31, %32 : vector<16x128xf32>
    %c0_13 = arith.constant 0 : index
    %c0_14 = arith.constant 0 : index
    %34 = vector.load %arg17[%c0_13, %c0_14] : memref<16x128xf32, #tpu.memory_space<vmem>>, vector<16x128xf32>
    tpu.vector_store %arg17[%c0_13, %c0_14], %33 {strides = array<i32>} : memref<16x128xf32, #tpu.memory_space<vmem>>, vector<16x128xf32>,
    %35 = tpu.iota {dimensions = array<i32: 1>} : vector<1x4xi32>
    %36 = vector.broadcast %2 : i32 to vector<1x4xi32>
    %37 = arith.cmpi eq, %35, %36 : vector<1x4xi32>
    %cst_15 = arith.constant 0.000000e+00 : f32
    %38 = vector.shape_cast %37 : vector<1x4xi1> to vector<1x4xi1>
    %39 = vector.broadcast %38 : vector<1x4xi1> to vector<128x4xi1>
    %40 = vector.broadcast %cst_15 : f32 to vector<128x4xf32>
    %41 = arith.select %39, %6, %40 : vector<128x4xi1>, vector<128x4xf32>
    %cst_16 = arith.constant dense<0.000000e+00> : vector<128xf32>
    %42 = vector.multi_reduction <add>, %41, %cst_16 [1] : vector<128x4xf32> to vector<128xf32>
    %43 = vector.shape_cast %42 : vector<128xf32> to vector<128x1xf32>
    %44 = vector.broadcast %43 : vector<128x1xf32> to vector<128x32xf32>
    %45 = arith.mulf %4, %44 : vector<128x32xf32>
    %46 = arith.addf %4, %45 : vector<128x32xf32>
    %c0_17 = arith.constant 0 : index
    %c0_18 = arith.constant 0 : index
    %c0_19 = arith.constant 0 : index
    %47 = vector.load %arg14[%c0_17, %c0_18, %c0_19] : memref<1x128x32xf32, #tpu.memory_space<vmem>>, vector<1x128x32xf32>
    %48 = vector.shape_cast %47 : vector<1x128x32xf32> to vector<128x32xf32>
    %49 = vector.shape_cast %46 : vector<128x32xf32> to vector<1x128x32xf32>
    tpu.vector_store %arg14[%c0_17, %c0_18, %c0_19], %49 {strides = array<i32>} : memref<1x128x32xf32, #tpu.memory_space<vmem>>, vector<1x128x32xf32>,
    %c0_20 = arith.constant 0 : index
    %c0_21 = arith.constant 0 : index
    %50 = vector.load %arg5[%c0_20, %c0_21] : memref<32x16xf32, #tpu.memory_space<vmem>>, vector<32x16xf32>
    %cst_22 = arith.constant dense<0.000000e+00> : vector<128x16xf32>
    %51 = tpu.matmul %46, %50, %cst_22 {dimension_numbers = #tpu.dot_dimension_numbers<[1], [0], [0], [1], [0, 0, 1, 1], [], []>} : vector<128x32xf32>, vector<32x16xf32>, vector<128x16xf32> -> vector<128x16xf32>
    %c0_23 = arith.constant 0 : index
    %c0_24 = arith.constant 0 : index
    %52 = vector.load %arg6[%c0_23, %c0_24] : memref<1x16xf32, #tpu.memory_space<vmem>>, vector<1x16xf32>
    %53 = vector.broadcast %52 : vector<1x16xf32> to vector<128x16xf32>
    %54 = arith.addf %51, %53 : vector<128x16xf32>
    %cst_25 = arith.constant 0.000000e+00 : f32
    %55 = vector.broadcast %cst_25 : f32 to vector<128x16xf32>
    %56 = arith.maximumf %54, %55 : vector<128x16xf32>
    %c0_26 = arith.constant 0 : index
    %c0_27 = arith.constant 0 : index
    %57 = vector.load %arg7[%c0_26, %c0_27] : memref<16x32xf32, #tpu.memory_space<vmem>>, vector<16x32xf32>
    %cst_28 = arith.constant dense<0.000000e+00> : vector<128x32xf32>
    %58 = tpu.matmul %56, %57, %cst_28 {dimension_numbers = #tpu.dot_dimension_numbers<[1], [0], [0], [1], [0, 0, 1, 1], [], []>} : vector<128x16xf32>, vector<16x32xf32>, vector<128x32xf32> -> vector<128x32xf32>
    %c0_29 = arith.constant 0 : index
    %c0_30 = arith.constant 0 : index
    %59 = vector.load %arg8[%c0_29, %c0_30] : memref<1x32xf32, #tpu.memory_space<vmem>>, vector<1x32xf32>
    %60 = vector.broadcast %59 : vector<1x32xf32> to vector<128x32xf32>
    %61 = arith.addf %58, %60 : vector<128x32xf32>
    %c0_31 = arith.constant 0 : index
    %c0_32 = arith.constant 0 : index
    %c0_33 = arith.constant 0 : index
    %62 = vector.load %arg15[%c0_31, %c0_32, %c0_33] : memref<1x128x32xf32, #tpu.memory_space<vmem>>, vector<1x128x32xf32>
    %63 = vector.shape_cast %62 : vector<1x128x32xf32> to vector<128x32xf32>
    %64 = vector.shape_cast %61 : vector<128x32xf32> to vector<1x128x32xf32>
    tpu.vector_store %arg15[%c0_31, %c0_32, %c0_33], %64 {strides = array<i32>} : memref<1x128x32xf32, #tpu.memory_space<vmem>>, vector<1x128x32xf32>,
    %c1_i32_34 = arith.constant 1 : i32
    %65 = arith.cmpi eq, %arg1, %c1_i32_34 : i32
    %66 = arith.extui %65 : i1 to i32
    %c0_i32_35 = arith.constant 0 : i32
    %67 = arith.cmpi ne, %66, %c0_i32_35 : i32
    scf.if %67 {
      %c0_36 = arith.constant 0 : index
      %c0_37 = arith.constant 0 : index
      %68 = vector.load %arg17[%c0_36, %c0_37] : memref<16x128xf32, #tpu.memory_space<vmem>>, vector<16x128xf32>
      %c0_38 = arith.constant 0 : index
      %c0_39 = arith.constant 0 : index
      %69 = vector.load %arg10[%c0_38, %c0_39] : memref<16x1xf32, #tpu.memory_space<vmem>>, vector<16x1xf32>
      %70 = vector.broadcast %69 : vector<16x1xf32> to vector<16x128xf32>
      %71 = arith.addf %68, %70 : vector<16x128xf32>
      %cst_40 = arith.constant 0.000000e+00 : f32
      %72 = vector.broadcast %cst_40 : f32 to vector<16x128xf32>
      %73 = arith.maximumf %71, %72 : vector<16x128xf32>
      %c0_41 = arith.constant 0 : index
      %c0_42 = arith.constant 0 : index
      %74 = vector.load %arg11[%c0_41, %c0_42] : memref<8x16xf32, #tpu.memory_space<vmem>>, vector<8x16xf32>
      %cst_43 = arith.constant dense<0.000000e+00> : vector<8x128xf32>
      %75 = tpu.matmul %74, %73, %cst_43 {dimension_numbers = #tpu.dot_dimension_numbers<[1], [0], [0], [1], [0, 0, 1, 1], [], []>} : vector<8x16xf32>, vector<16x128xf32>, vector<8x128xf32> -> vector<8x128xf32>
      %76 = tpu.iota {dimensions = array<i32: 1>} : vector<8x128xi32>
      %c32_i32 = arith.constant 32 : i32
      %77 = arith.muli %2, %c32_i32 : i32
      %78 = vector.broadcast %77 : i32 to vector<8x128xi32>
      %79 = arith.cmpi sge, %76, %78 : vector<8x128xi32>
      %c1_i32_44 = arith.constant 1 : i32
      %80 = arith.addi %2, %c1_i32_44 : i32
      %c32_i32_45 = arith.constant 32 : i32
      %81 = arith.muli %80, %c32_i32_45 : i32
      %82 = vector.broadcast %81 : i32 to vector<8x128xi32>
      %83 = arith.cmpi slt, %76, %82 : vector<8x128xi32>
      %84 = arith.andi %79, %83 : vector<8x128xi1>
      %c0_46 = arith.constant 0 : index
      %c0_47 = arith.constant 0 : index
      %85 = vector.load %arg12[%c0_46, %c0_47] : memref<8x128xf32, #tpu.memory_space<vmem>>, vector<8x128xf32>
      %c0_48 = arith.constant 0 : index
      %c0_49 = arith.constant 0 : index
      %86 = vector.load %arg13[%c0_48, %c0_49] : memref<8x128xf32, #tpu.memory_space<vmem>>, vector<8x128xf32>
      %87 = arith.select %84, %85, %86 : vector<8x128xi1>, vector<8x128xf32>
      %88 = arith.addf %75, %87 : vector<8x128xf32>
      %c0_50 = arith.constant 0 : index
      %c0_51 = arith.constant 0 : index
      %c0_52 = arith.constant 0 : index
      %89 = vector.load %arg16[%c0_50, %c0_51, %c0_52] : memref<1x8x128xf32, #tpu.memory_space<vmem>>, vector<1x8x128xf32>
      %90 = vector.shape_cast %89 : vector<1x8x128xf32> to vector<8x128xf32>
      %91 = vector.shape_cast %88 : vector<8x128xf32> to vector<1x8x128xf32>
      tpu.vector_store %arg16[%c0_50, %c0_51, %c0_52], %91 {strides = array<i32>} : memref<1x8x128xf32, #tpu.memory_space<vmem>>, vector<1x8x128xf32>,
    } else {
    }
    return
  }
  func.func @transform_0(%arg0: i32, %arg1: i32, %arg2: memref<2xi32, #tpu.memory_space<smem>>) -> (i32, i32, i32) {
    %c0_i32 = arith.constant 0 : i32
    %c0_i32_0 = arith.constant 0 : i32
    return %arg0, %arg1, %c0_i32 : i32, i32, i32
  }
  func.func @transform_1(%arg0: i32, %arg1: i32, %arg2: memref<2xi32, #tpu.memory_space<smem>>) -> (i32, i32) {
    %c0_i32 = arith.constant 0 : i32
    %c0_i32_0 = arith.constant 0 : i32
    %c0_i32_1 = arith.constant 0 : i32
    return %c0_i32, %c0_i32_0 : i32, i32
  }
  func.func @transform_2(%arg0: i32, %arg1: i32, %arg2: memref<2xi32, #tpu.memory_space<smem>>) -> (i32, i32) {
    %c0_i32 = arith.constant 0 : i32
    %c0_i32_0 = arith.constant 0 : i32
    %c0_i32_1 = arith.constant 0 : i32
    return %c0_i32, %c0_i32_0 : i32, i32
  }
  func.func @transform_3(%arg0: i32, %arg1: i32, %arg2: memref<2xi32, #tpu.memory_space<smem>>) -> (i32, i32) {
    %c0_i32 = arith.constant 0 : i32
    %c0_i32_0 = arith.constant 0 : i32
    %c0_i32_1 = arith.constant 0 : i32
    return %c0_i32, %c0_i32_0 : i32, i32
  }
  func.func @transform_4(%arg0: i32, %arg1: i32, %arg2: memref<2xi32, #tpu.memory_space<smem>>) -> (i32, i32) {
    %c0_i32 = arith.constant 0 : i32
    %c0_i32_0 = arith.constant 0 : i32
    %c0_i32_1 = arith.constant 0 : i32
    return %c0_i32, %c0_i32_0 : i32, i32
  }
  func.func @transform_5(%arg0: i32, %arg1: i32, %arg2: memref<2xi32, #tpu.memory_space<smem>>) -> (i32, i32) {
    %c0_i32 = arith.constant 0 : i32
    %c0_i32_0 = arith.constant 0 : i32
    %c0_i32_1 = arith.constant 0 : i32
    return %c0_i32, %c0_i32_0 : i32, i32
  }
  func.func @transform_6(%arg0: i32, %arg1: i32, %arg2: memref<2xi32, #tpu.memory_space<smem>>) -> (i32, i32) {
    %c0_i32 = arith.constant 0 : i32
    %c0_i32_0 = arith.constant 0 : i32
    return %c0_i32, %arg1 : i32, i32
  }
  func.func @transform_7(%arg0: i32, %arg1: i32, %arg2: memref<2xi32, #tpu.memory_space<smem>>) -> (i32, i32) {
    %c0_i32 = arith.constant 0 : i32
    %c0_i32_0 = arith.constant 0 : i32
    %c0_i32_1 = arith.constant 0 : i32
    return %c0_i32, %c0_i32_0 : i32, i32
  }
  func.func @transform_8(%arg0: i32, %arg1: i32, %arg2: memref<2xi32, #tpu.memory_space<smem>>) -> (i32, i32) {
    %c0_i32 = arith.constant 0 : i32
    %c0_i32_0 = arith.constant 0 : i32
    %c0_i32_1 = arith.constant 0 : i32
    return %c0_i32, %c0_i32_0 : i32, i32
  }
  func.func @transform_9(%arg0: i32, %arg1: i32, %arg2: memref<2xi32, #tpu.memory_space<smem>>) -> (i32, i32) {
    %c0_i32 = arith.constant 0 : i32
    %c0_i32_0 = arith.constant 0 : i32
    %c0_i32_1 = arith.constant 0 : i32
    return %c0_i32, %c0_i32_0 : i32, i32
  }
  func.func @transform_10(%arg0: i32, %arg1: i32, %arg2: memref<2xi32, #tpu.memory_space<smem>>) -> (i32, i32) {
    %c0_i32 = arith.constant 0 : i32
    %c0_i32_0 = arith.constant 0 : i32
    %c0_i32_1 = arith.constant 0 : i32
    return %c0_i32, %c0_i32_0 : i32, i32
  }
  func.func @transform_11(%arg0: i32, %arg1: i32, %arg2: memref<2xi32, #tpu.memory_space<smem>>) -> (i32, i32, i32) {
    %c0_i32 = arith.constant 0 : i32
    %c0_i32_0 = arith.constant 0 : i32
    return %arg0, %arg1, %c0_i32 : i32, i32, i32
  }
  func.func @transform_12(%arg0: i32, %arg1: i32, %arg2: memref<2xi32, #tpu.memory_space<smem>>) -> (i32, i32, i32) {
    %c0_i32 = arith.constant 0 : i32
    %c0_i32_0 = arith.constant 0 : i32
    return %arg0, %arg1, %c0_i32 : i32, i32, i32
  }
  func.func @transform_13(%arg0: i32, %arg1: i32, %arg2: memref<2xi32, #tpu.memory_space<smem>>) -> (i32, i32, i32) {
    %c0_i32 = arith.constant 0 : i32
    %c0_i32_0 = arith.constant 0 : i32
    %c0_i32_1 = arith.constant 0 : i32
    return %arg0, %c0_i32, %c0_i32_0 : i32, i32, i32
  }
}

</mosaic_0001>

<llo_original>
// kernel: tpu_custom_call.1
$region0: #{tpu_custom_call.1}
  #allocation0 [shape = 'u32[]', space=smem, size = 0x4, offset = 0x4, fixed_abs, tag = 'smem constant byte address 0x4 - core index']
  #allocation1 [shape = 'u32[144,128]{1,0:T(1,128)}', space=vmem, size = 0x12000, scoped, tag = 'internal scratch']
  #allocation2 [shape = 'f32[16,128]{1,0:T(8,128)}', space=vmem, size = 0x2000, scoped, tag = 'scratch operand']
  #allocation3 [shape = 's32[1]{0}', space=sflag, size = 0x4, scoped, tag = 'scoped memory for tpu_custom_call.1']
  #allocation4 [shape = 'u8[512]{0}', space=smem, size = 0x200, scoped, tag = 'prefetched SMEM operand 0']
  %s0 = inlined_call_operand.vmem [shape: s32[2], index: 0, kind: input, shape index: {}]
  %s1 = inlined_call_operand.vmem [shape: f32[2,256,32], index: 1, kind: input, shape index: {}]
  %s2 = inlined_call_operand.vmem [shape: f32[32,4], index: 2, kind: input, shape index: {}]
  %s3 = inlined_call_operand.vmem [shape: f32[32,16], index: 3, kind: input, shape index: {}]
  %s4 = inlined_call_operand.vmem [shape: f32[1,16], index: 4, kind: input, shape index: {}]
  %s5 = inlined_call_operand.vmem [shape: f32[16,32], index: 5, kind: input, shape index: {}]
  %s6 = inlined_call_operand.vmem [shape: f32[1,32], index: 6, kind: input, shape index: {}]
  %s7 = inlined_call_operand.vmem [shape: f32[16,256], index: 7, kind: input, shape index: {}]
  %s8 = inlined_call_operand.vmem [shape: f32[16,1], index: 8, kind: input, shape index: {}]
  %s9 = inlined_call_operand.vmem [shape: f32[8,16], index: 9, kind: input, shape index: {}]
  %s10 = inlined_call_operand.vmem [shape: f32[8,128], index: 10, kind: input, shape index: {}]
  %s11 = inlined_call_operand.vmem [shape: f32[8,128], index: 11, kind: input, shape index: {}]
  %s12 = inlined_call_operand.vmem [shape: f32[2,256,32], index: 12, kind: output, shape index: {0}]
  %s13 = inlined_call_operand.vmem [shape: f32[2,256,32], index: 13, kind: output, shape index: {1}]
  %s14 = inlined_call_operand.hbm [shape: f32[2,8,128], index: 14, kind: output, shape index: {2}]
  %15 = xla_tuple %s12, %s13, %s14
  %s16 = sld [smem:[#allocation0]]
  $region139: #{tpu_custom_call.1} parent=0
    _
  %s18 = ssub.s32 1, %s16
  %s19 = scalar_select 0, %s18, %s16
  %s20 = sshll.u32 %s0, 4
  %s21 = int_to_ptr.vmem [resolvable:$true] %s20
  %23 = dma.vmem_to_smem %s21, 16, [#allocation4], [#allocation3]
  %24 = dma.done [#allocation3], 16
  %25 = sfence
  $region1: #{tpu_custom_call.1} parent=0
    #allocation5 [shape = 'u8[16384]{0}', space=vmem, size = 0x4000, scoped, tag = 'input window, operand 7']
    #allocation6 [shape = 'u8[8192]{0}', space=vmem, size = 0x2000, scoped, tag = 'output window, operand 2']
    #allocation7 [shape = 's32[2]{0}', space=sflag, size = 0x8, scoped, tag = 'scoped memory for tpu_custom_call.1']
    %26 = vsyncpa [#allocation7], 0
    %s27 = scalar_lea.sflag [#allocation7], 1
    %28 = vsyncpa %s27, 0
    loop: start=0, step=1, limit=6
    $region2: #{tpu_custom_call.1} parent=1 // loop_pre_header
      _
    $region3: #{tpu_custom_call.1} parent=1 // loop_header
      %s30 = sphi 0, %s34
      %p31 = scmp.ge.s32.totalorder %s30, 6
      %s37 = sphi 0, %s49
      %s38 = sphi 0, %s45
      %s39 = sphi 0, %s37
      %s40 = sphi 0, %s38
      %s41 = sphi 0, %s39
      %s42 = sphi 0, %s40
      %s54 = sphi 0, %s56
      %s57 = sphi 0, %s54
      %s58 = sphi 0, %s57
      %s74 = sphi 0, %s58
      %s78 = sphi 0, %s78
      %s80 = sphi 0, %s78
      %s81 = sphi 0, %s80
      %s95 = sphi 0, %s81
      %s99 = sphi 0, %s99
      %s101 = sphi 0, %s99
      %s102 = sphi 0, %s101
      %s116 = sphi 0, %s102
      %s120 = sphi 0, %s120
      %s122 = sphi 0, %s120
      %s123 = sphi 0, %s122
      %s137 = sphi 0, %s123
      %s141 = sphi 0, %s141
      %s143 = sphi 0, %s141
      %s144 = sphi 0, %s143
      %s158 = sphi 0, %s144
      %s162 = sphi 0, %s162
      %s164 = sphi 0, %s162
      %s165 = sphi 0, %s164
      %s179 = sphi 0, %s165
      %s185 = sphi 0, %s187
      %s188 = sphi 0, %s185
      %s189 = sphi 0, %s188
      %s205 = sphi 0, %s189
      %s209 = sphi 0, %s209
      %s211 = sphi 0, %s209
      %s212 = sphi 0, %s211
      %s226 = sphi 0, %s212
      %s230 = sphi 0, %s230
      %s232 = sphi 0, %s230
      %s233 = sphi 0, %s232
      %s247 = sphi 0, %s233
      %s251 = sphi 0, %s251
      %s253 = sphi 0, %s251
      %s254 = sphi 0, %s253
      %s268 = sphi 0, %s254
      %s272 = sphi 0, %s272
      %s274 = sphi 0, %s272
      %s275 = sphi 0, %s274
      %s289 = sphi 0, %s275
      %s297 = sphi 0, %s299
      %s300 = sphi 0, %s297
      %s301 = sphi 0, %s300
      %s317 = sphi 0, %s301
      %s325 = sphi 0, %s327
      %s328 = sphi 0, %s325
      %s329 = sphi 0, %s328
      %s345 = sphi 0, %s329
      %s351 = sphi 0, %s353
      %s354 = sphi 0, %s351
      %s355 = sphi 0, %s354
      %s371 = sphi 0, %s355
    $region4: #{tpu_custom_call.1} parent=1 // loop_header_branch
      %33 = sbr.rel (%p31) target = $region8
    $region5: #{tpu_custom_call.1} parent=1 // loop_body
      %s35 = ssub.s32 %s30, 1
      %s36 = ssub.s32 %s30, 2
      %s43 = sadd.s32 1, %s38
      %p44 = scmp.ge.s32.totalorder %s43, 2
      %s45 = scalar_select %p44, 0, %s43
      %s46 = sadd.s32 1, %s37
      %s47 = scalar_select %p44, %s46, %s37
      %p48 = scmp.ge.s32.totalorder %s47, 2
      %s49 = scalar_select %p48, 0, %s47
      %s50 = ssub.s32 %s37, %s49
      %s51 = ssub.s32 %s38, %s45
      %s52 = sor.u32 %s50, %s51
      %p53 = scmp.eq.s32.totalorder %s52, 0
      %s55 = sadd.s32 %s54, 1
      %s56 = scalar_select %p53, %s54, %s55
      %p59 = pneg %p53
      %p60 = scmp.eq.s32.totalorder %s30, 3
      %p61 = por %p59, %p60
      %p62 = scmp.ne.s32.totalorder %s54, %s57
      %p63 = scmp.eq.s32.totalorder %s30, 0
      %p64 = por %p62, %p63
      %p65 = scmp.ne.s32.totalorder %s54, %s57
      %p66 = scmp.eq.s32.totalorder %s35, 3
      %p67 = por %p65, %p66
      %p68 = scmp.ne.s32.totalorder %s57, %s58
      %p69 = scmp.eq.s32.totalorder %s35, 0
      %p70 = por %p68, %p69
      %p71 = scmp.ne.s32.totalorder %s57, %s58
      %p72 = scmp.eq.s32.totalorder %s36, 3
      %p73 = por %p71, %p72
      %p75 = scmp.ne.s32.totalorder %s58, %s74
      %p76 = scmp.eq.s32.totalorder %s36, 0
      %p77 = por %p75, %p76
      %s79 = sadd.s32 %s78, 1
      %p82 = scmp.eq.s32.totalorder %s30, 3
      %p83 = scmp.ne.s32.totalorder %s78, %s80
      %p84 = scmp.eq.s32.totalorder %s30, 0
      %p85 = por %p83, %p84
      %p86 = scmp.ne.s32.totalorder %s78, %s80
      %p87 = scmp.eq.s32.totalorder %s35, 3
      %p88 = por %p86, %p87
      %p89 = scmp.ne.s32.totalorder %s80, %s81
      %p90 = scmp.eq.s32.totalorder %s35, 0
      %p91 = por %p89, %p90
      %p92 = scmp.ne.s32.totalorder %s80, %s81
      %p93 = scmp.eq.s32.totalorder %s36, 3
      %p94 = por %p92, %p93
      %p96 = scmp.ne.s32.totalorder %s81, %s95
      %p97 = scmp.eq.s32.totalorder %s36, 0
      %p98 = por %p96, %p97
      %s100 = sadd.s32 %s99, 1
      %p103 = scmp.eq.s32.totalorder %s30, 3
      %p104 = scmp.ne.s32.totalorder %s99, %s101
      %p105 = scmp.eq.s32.totalorder %s30, 0
      %p106 = por %p104, %p105
      %p107 = scmp.ne.s32.totalorder %s99, %s101
      %p108 = scmp.eq.s32.totalorder %s35, 3
      %p109 = por %p107, %p108
      %p110 = scmp.ne.s32.totalorder %s101, %s102
      %p111 = scmp.eq.s32.totalorder %s35, 0
      %p112 = por %p110, %p111
      %p113 = scmp.ne.s32.totalorder %s101, %s102
      %p114 = scmp.eq.s32.totalorder %s36, 3
      %p115 = por %p113, %p114
      %p117 = scmp.ne.s32.totalorder %s102, %s116
      %p118 = scmp.eq.s32.totalorder %s36, 0
      %p119 = por %p117, %p118
      %s121 = sadd.s32 %s120, 1
      %p124 = scmp.eq.s32.totalorder %s30, 3
      %p125 = scmp.ne.s32.totalorder %s120, %s122
      %p126 = scmp.eq.s32.totalorder %s30, 0
      %p127 = por %p125, %p126
      %p128 = scmp.ne.s32.totalorder %s120, %s122
      %p129 = scmp.eq.s32.totalorder %s35, 3
      %p130 = por %p128, %p129
      %p131 = scmp.ne.s32.totalorder %s122, %s123
      %p132 = scmp.eq.s32.totalorder %s35, 0
      %p133 = por %p131, %p132
      %p134 = scmp.ne.s32.totalorder %s122, %s123
      %p135 = scmp.eq.s32.totalorder %s36, 3
      %p136 = por %p134, %p135
      %p138 = scmp.ne.s32.totalorder %s123, %s137
      %p139 = scmp.eq.s32.totalorder %s36, 0
      %p140 = por %p138, %p139
      %s142 = sadd.s32 %s141, 1
      %p145 = scmp.eq.s32.totalorder %s30, 3
      %p146 = scmp.ne.s32.totalorder %s141, %s143
      %p147 = scmp.eq.s32.totalorder %s30, 0
      %p148 = por %p146, %p147
      %p149 = scmp.ne.s32.totalorder %s141, %s143
      %p150 = scmp.eq.s32.totalorder %s35, 3
      %p151 = por %p149, %p150
      %p152 = scmp.ne.s32.totalorder %s143, %s144
      %p153 = scmp.eq.s32.totalorder %s35, 0
      %p154 = por %p152, %p153
      %p155 = scmp.ne.s32.totalorder %s143, %s144
      %p156 = scmp.eq.s32.totalorder %s36, 3
      %p157 = por %p155, %p156
      %p159 = scmp.ne.s32.totalorder %s144, %s158
      %p160 = scmp.eq.s32.totalorder %s36, 0
      %p161 = por %p159, %p160
      %s163 = sadd.s32 %s162, 1
      %p166 = scmp.eq.s32.totalorder %s30, 3
      %p167 = scmp.ne.s32.totalorder %s162, %s164
      %p168 = scmp.eq.s32.totalorder %s30, 0
      %p169 = por %p167, %p168
      %p170 = scmp.ne.s32.totalorder %s162, %s164
      %p171 = scmp.eq.s32.totalorder %s35, 3
      %p172 = por %p170, %p171
      %p173 = scmp.ne.s32.totalorder %s164, %s165
      %p174 = scmp.eq.s32.totalorder %s35, 0
      %p175 = por %p173, %p174
      %p176 = scmp.ne.s32.totalorder %s164, %s165
      %p177 = scmp.eq.s32.totalorder %s36, 3
      %p178 = por %p176, %p177
      %p180 = scmp.ne.s32.totalorder %s165, %s179
      %p181 = scmp.eq.s32.totalorder %s36, 0
      %p182 = por %p180, %p181
      %s183 = ssub.s32 %s38, %s45
      %p184 = scmp.eq.s32.totalorder %s183, 0
      %s186 = sadd.s32 %s185, 1
      %s187 = scalar_select %p184, %s185, %s186
      %p190 = pneg %p184
      %p191 = scmp.eq.s32.totalorder %s30, 3
      %p192 = por %p190, %p191
      %p193 = scmp.ne.s32.totalorder %s185, %s188
      %p194 = scmp.eq.s32.totalorder %s30, 0
      %p195 = por %p193, %p194
      %p196 = scmp.ne.s32.totalorder %s185, %s188
      %p197 = scmp.eq.s32.totalorder %s35, 3
      %p198 = por %p196, %p197
      %p199 = scmp.ne.s32.totalorder %s188, %s189
      %p200 = scmp.eq.s32.totalorder %s35, 0
      %p201 = por %p199, %p200
      %p202 = scmp.ne.s32.totalorder %s188, %s189
      %p203 = scmp.eq.s32.totalorder %s36, 3
      %p204 = por %p202, %p203
      %p206 = scmp.ne.s32.totalorder %s189, %s205
      %p207 = scmp.eq.s32.totalorder %s36, 0
      %p208 = por %p206, %p207
      %s210 = sadd.s32 %s209, 1
      %p213 = scmp.eq.s32.totalorder %s30, 3
      %p214 = scmp.ne.s32.totalorder %s209, %s211
      %p215 = scmp.eq.s32.totalorder %s30, 0
      %p216 = por %p214, %p215
      %p217 = scmp.ne.s32.totalorder %s209, %s211
      %p218 = scmp.eq.s32.totalorder %s35, 3
      %p219 = por %p217, %p218
      %p220 = scmp.ne.s32.totalorder %s211, %s212
      %p221 = scmp.eq.s32.totalorder %s35, 0
      %p222 = por %p220, %p221
      %p223 = scmp.ne.s32.totalorder %s211, %s212
      %p224 = scmp.eq.s32.totalorder %s36, 3
      %p225 = por %p223, %p224
      %p227 = scmp.ne.s32.totalorder %s212, %s226
      %p228 = scmp.eq.s32.totalorder %s36, 0
      %p229 = por %p227, %p228
      %s231 = sadd.s32 %s230, 1
      %p234 = scmp.eq.s32.totalorder %s30, 3
      %p235 = scmp.ne.s32.totalorder %s230, %s232
      %p236 = scmp.eq.s32.totalorder %s30, 0
      %p237 = por %p235, %p236
      %p238 = scmp.ne.s32.totalorder %s230, %s232
      %p239 = scmp.eq.s32.totalorder %s35, 3
      %p240 = por %p238, %p239
      %p241 = scmp.ne.s32.totalorder %s232, %s233
      %p242 = scmp.eq.s32.totalorder %s35, 0
      %p243 = por %p241, %p242
      %p244 = scmp.ne.s32.totalorder %s232, %s233
      %p245 = scmp.eq.s32.totalorder %s36, 3
      %p246 = por %p244, %p245
      %p248 = scmp.ne.s32.totalorder %s233, %s247
      %p249 = scmp.eq.s32.totalorder %s36, 0
      %p250 = por %p248, %p249
      %s252 = sadd.s32 %s251, 1
      %p255 = scmp.eq.s32.totalorder %s30, 3
      %p256 = scmp.ne.s32.totalorder %s251, %s253
      %p257 = scmp.eq.s32.totalorder %s30, 0
      %p258 = por %p256, %p257
      %p259 = scmp.ne.s32.totalorder %s251, %s253
      %p260 = scmp.eq.s32.totalorder %s35, 3
      %p261 = por %p259, %p260
      %p262 = scmp.ne.s32.totalorder %s253, %s254
      %p263 = scmp.eq.s32.totalorder %s35, 0
      %p264 = por %p262, %p263
      %p265 = scmp.ne.s32.totalorder %s253, %s254
      %p266 = scmp.eq.s32.totalorder %s36, 3
      %p267 = por %p265, %p266
      %p269 = scmp.ne.s32.totalorder %s254, %s268
      %p270 = scmp.eq.s32.totalorder %s36, 0
      %p271 = por %p269, %p270
      %s273 = sadd.s32 %s272, 1
      %p276 = scmp.eq.s32.totalorder %s30, 3
      %p277 = scmp.ne.s32.totalorder %s272, %s274
      %p278 = scmp.eq.s32.totalorder %s30, 0
      %p279 = por %p277, %p278
      %p280 = scmp.ne.s32.totalorder %s272, %s274
      %p281 = scmp.eq.s32.totalorder %s35, 3
      %p282 = por %p280, %p281
      %p283 = scmp.ne.s32.totalorder %s274, %s275
      %p284 = scmp.eq.s32.totalorder %s35, 0
      %p285 = por %p283, %p284
      %p286 = scmp.ne.s32.totalorder %s274, %s275
      %p287 = scmp.eq.s32.totalorder %s36, 3
      %p288 = por %p286, %p287
      %p290 = scmp.ne.s32.totalorder %s275, %s289
      %p291 = scmp.eq.s32.totalorder %s36, 0
      %p292 = por %p290, %p291
      %s293 = ssub.s32 %s37, %s49
      %s294 = ssub.s32 %s38, %s45
      %s295 = sor.u32 %s293, %s294
      %p296 = scmp.eq.s32.totalorder %s295, 0
      %s298 = sadd.s32 %s297, 1
      %s299 = scalar_select %p296, %s297, %s298
      %p302 = pneg %p296
      %p303 = scmp.eq.s32.totalorder %s30, 3
      %p304 = por %p302, %p303
      %p305 = scmp.ne.s32.totalorder %s297, %s300
      %p306 = scmp.eq.s32.totalorder %s30, 0
      %p307 = por %p305, %p306
      %p308 = scmp.ne.s32.totalorder %s297, %s300
      %p309 = scmp.eq.s32.totalorder %s35, 3
      %p310 = por %p308, %p309
      %p311 = scmp.ne.s32.totalorder %s300, %s301
      %p312 = scmp.eq.s32.totalorder %s35, 0
      %p313 = por %p311, %p312
      %p314 = scmp.ne.s32.totalorder %s300, %s301
      %p315 = scmp.eq.s32.totalorder %s36, 3
      %p316 = por %p314, %p315
      %p318 = scmp.ne.s32.totalorder %s301, %s317
      %p319 = scmp.eq.s32.totalorder %s36, 0
      %p320 = por %p318, %p319
      %s321 = ssub.s32 %s37, %s49
      %s322 = ssub.s32 %s38, %s45
      %s323 = sor.u32 %s321, %s322
      %p324 = scmp.eq.s32.totalorder %s323, 0
      %s326 = sadd.s32 %s325, 1
      %s327 = scalar_select %p324, %s325, %s326
      %p330 = pneg %p324
      %p331 = scmp.eq.s32.totalorder %s30, 3
      %p332 = por %p330, %p331
      %p333 = scmp.ne.s32.totalorder %s325, %s328
      %p334 = scmp.eq.s32.totalorder %s30, 0
      %p335 = por %p333, %p334
      %p336 = scmp.ne.s32.totalorder %s325, %s328
      %p337 = scmp.eq.s32.totalorder %s35, 3
      %p338 = por %p336, %p337
      %p339 = scmp.ne.s32.totalorder %s328, %s329
      %p340 = scmp.eq.s32.totalorder %s35, 0
      %p341 = por %p339, %p340
      %p342 = scmp.ne.s32.totalorder %s328, %s329
      %p343 = scmp.eq.s32.totalorder %s36, 3
      %p344 = por %p342, %p343
      %p346 = scmp.ne.s32.totalorder %s329, %s345
      %p347 = scmp.eq.s32.totalorder %s36, 0
      %p348 = por %p346, %p347
      %s349 = ssub.s32 %s37, %s49
      %p350 = scmp.eq.s32.totalorder %s349, 0
      %s352 = sadd.s32 %s351, 1
      %s353 = scalar_select %p350, %s351, %s352
      %p356 = pneg %p350
      %p357 = scmp.eq.s32.totalorder %s30, 3
      %p358 = por %p356, %p357
      %p359 = scmp.ne.s32.totalorder %s351, %s354
      %p360 = scmp.eq.s32.totalorder %s30, 0
      %p361 = por %p359, %p360
      %p362 = scmp.ne.s32.totalorder %s351, %s354
      %p363 = scmp.eq.s32.totalorder %s35, 3
      %p364 = por %p362, %p363
      %p365 = scmp.ne.s32.totalorder %s354, %s355
      %p366 = scmp.eq.s32.totalorder %s35, 0
      %p367 = por %p365, %p366
      %p368 = scmp.ne.s32.totalorder %s354, %s355
      %p369 = scmp.eq.s32.totalorder %s36, 3
      %p370 = por %p368, %p369
      %p372 = scmp.ne.s32.totalorder %s355, %s371
      %p373 = scmp.eq.s32.totalorder %s36, 0
      %p374 = por %p372, %p373
      %p375 = scmp.le.s32.totalorder 1, %s30
      %p376 = scmp.lt.s32.totalorder %s30, 5
      %p377 = pnand %p375, %p376
      %p378 = pneg %p377
      // Predicated region
      $region9: #{tpu_custom_call.1} parent=5 // pred_check
        _
      $region10: #{tpu_custom_call.1} parent=5 // pred_check_branch
        %380 = sbr.rel (%p377) target = $region12
      $region11: #{tpu_custom_call.1} parent=5 // pred_region
        %s381 = ssub.s32 %s30, 1
        // Predicated region
        $region13: #{tpu_custom_call.1} parent=11 // pred_check
          %p382 = pneg %p91
        $region14: #{tpu_custom_call.1} parent=11 // pred_check_branch
          %384 = sbr.rel (%p382) target = $region16
        $region15: #{tpu_custom_call.1} parent=11 // pred_region
          _
        $region16: #{tpu_custom_call.1} parent=11 // pred_fallthru
          _
        // Predicated region
        $region17: #{tpu_custom_call.1} parent=11 // pred_check
          %p385 = pneg %p112
        $region18: #{tpu_custom_call.1} parent=11 // pred_check_branch
          %387 = sbr.rel (%p385) target = $region20
        $region19: #{tpu_custom_call.1} parent=11 // pred_region
          _
        $region20: #{tpu_custom_call.1} parent=11 // pred_fallthru
          _
        // Predicated region
        $region21: #{tpu_custom_call.1} parent=11 // pred_check
          %p388 = pneg %p133
        $region22: #{tpu_custom_call.1} parent=11 // pred_check_branch
          %390 = sbr.rel (%p388) target = $region24
        $region23: #{tpu_custom_call.1} parent=11 // pred_region
          _
        $region24: #{tpu_custom_call.1} parent=11 // pred_fallthru
          _
        // Predicated region
        $region25: #{tpu_custom_call.1} parent=11 // pred_check
          %p391 = pneg %p154
        $region26: #{tpu_custom_call.1} parent=11 // pred_check_branch
          %393 = sbr.rel (%p391) target = $region28
        $region27: #{tpu_custom_call.1} parent=11 // pred_region
          _
        $region28: #{tpu_custom_call.1} parent=11 // pred_fallthru
          _
        // Predicated region
        $region29: #{tpu_custom_call.1} parent=11 // pred_check
          %p394 = pneg %p175
        $region30: #{tpu_custom_call.1} parent=11 // pred_check_branch
          %396 = sbr.rel (%p394) target = $region32
        $region31: #{tpu_custom_call.1} parent=11 // pred_region
          _
        $region32: #{tpu_custom_call.1} parent=11 // pred_fallthru
          _
        // Predicated region
        $region33: #{tpu_custom_call.1} parent=11 // pred_check
          %p397 = pneg %p222
        $region34: #{tpu_custom_call.1} parent=11 // pred_check_branch
          %399 = sbr.rel (%p397) target = $region36
        $region35: #{tpu_custom_call.1} parent=11 // pred_region
          _
        $region36: #{tpu_custom_call.1} parent=11 // pred_fallthru
          _
        // Predicated region
        $region37: #{tpu_custom_call.1} parent=11 // pred_check
          %p400 = pneg %p243
        $region38: #{tpu_custom_call.1} parent=11 // pred_check_branch
          %402 = sbr.rel (%p400) target = $region40
        $region39: #{tpu_custom_call.1} parent=11 // pred_region
          _
        $region40: #{tpu_custom_call.1} parent=11 // pred_fallthru
          _
        // Predicated region
        $region41: #{tpu_custom_call.1} parent=11 // pred_check
          %p403 = pneg %p264
        $region42: #{tpu_custom_call.1} parent=11 // pred_check_branch
          %405 = sbr.rel (%p403) target = $region44
        $region43: #{tpu_custom_call.1} parent=11 // pred_region
          _
        $region44: #{tpu_custom_call.1} parent=11 // pred_fallthru
          _
        // Predicated region
        $region45: #{tpu_custom_call.1} parent=11 // pred_check
          %p406 = pneg %p285
        $region46: #{tpu_custom_call.1} parent=11 // pred_check_branch
          %408 = sbr.rel (%p406) target = $region48
        $region47: #{tpu_custom_call.1} parent=11 // pred_region
          _
        $region48: #{tpu_custom_call.1} parent=11 // pred_fallthru
          _
      $region12: #{tpu_custom_call.1} parent=5 // pred_fallthru
        _
      %p409 = scmp.lt.s32.totalorder %s30, 4
      // Predicated region
      $region49: #{tpu_custom_call.1} parent=5 // pred_check
        %p410 = pneg %p409
      $region50: #{tpu_custom_call.1} parent=5 // pred_check_branch
        %412 = sbr.rel (%p410) target = $region52
      $region51: #{tpu_custom_call.1} parent=5 // pred_region
        // Predicated region
        $region53: #{tpu_custom_call.1} parent=51 // pred_check
          %p413 = pneg %p64
        $region54: #{tpu_custom_call.1} parent=51 // pred_check_branch
          %415 = sbr.rel (%p413) target = $region56
        $region55: #{tpu_custom_call.1} parent=51 // pred_region
          %s416 = smul.u32 16, %s38
          %p417 = scmp.lt.s32.totalorder %s37, 1
          %s418 = scalar_select %p417, %s37, 1
          %p419 = scmp.lt.s32.totalorder %s416, 31
          %s420 = scalar_select %p419, %s416, 31
          %s421 = smul.addr %s418, 32
          %s422 = sadd.s32 %s420, %s421
          %s423 = smul.addr %s422, 8
          %s424 = scalar_lea.vmem %s1, %s423
          %s425 = smul.u32 16, %s38
        $region56: #{tpu_custom_call.1} parent=51 // pred_fallthru
          _
        // Predicated region
        $region57: #{tpu_custom_call.1} parent=51 // pred_check
          %p426 = pneg %p195
        $region58: #{tpu_custom_call.1} parent=51 // pred_check_branch
          %428 = sbr.rel (%p426) target = $region60
        $region59: #{tpu_custom_call.1} parent=51 // pred_region
          %s429 = sand.u32 %s185, 1
          %s430 = sand.u32 %s185, 1
          %s431 = smul.addr %s430, 16
          %s432 = scalar_lea.vmem [#allocation5], %s431
          %s433 = smul.addr %s38, 8
          %s434 = scalar_lea.vmem %s7, %s433
          // Predicated region
          $region61: #{tpu_custom_call.1} parent=59 // pred_check
            _
          $region62: #{tpu_custom_call.1} parent=59 // pred_check_branch
            %436 = sbr.rel (0) target = $region64
          $region63: #{tpu_custom_call.1} parent=59 // pred_region
            // Predicated region
            $region65: #{tpu_custom_call.1} parent=63 // pred_check
              _
            $region66: #{tpu_custom_call.1} parent=63 // pred_check_branch
              %438 = sbr.rel (0) target = $region68
            $region67: #{tpu_custom_call.1} parent=63 // pred_region
              // Predicated region
              $region80: #{tpu_custom_call.1} parent=67 // pred_check
                _
              $region81: #{tpu_custom_call.1} parent=67 // pred_check_branch
                %455 = sbr.rel (0) target = $region83
              $region82: #{tpu_custom_call.1} parent=67 // pred_region
                loop: start=0, step=1, limit=1
                $region84: #{tpu_custom_call.1} parent=82 // loop_pre_header
                  _
                $region85: #{tpu_custom_call.1} parent=82 // loop_header
                  %s457 = sphi 0, %s461
                  %p458 = scmp.ge.s32.totalorder %s457, 1
                  %s462 = sphi %s434, %s434
                  %s463 = sphi %s432, %s432
                $region86: #{tpu_custom_call.1} parent=82 // loop_header_branch
                  %460 = sbr.rel (%p458) target = $region90
                $region87: #{tpu_custom_call.1} parent=82 // loop_body
                  %v464 = vld [vmem:[%s462] sm:$0xff]
                  %465 = vst [vmem:[%s463] sm:$0xff] %v464
                  %v466 = vld [vmem:[%s462 + $0x10] sm:$0xff]
                  %467 = vst [vmem:[%s463 + $0x8] sm:$0xff] %v466
                $region88: #{tpu_custom_call.1} parent=82 // loop_footer
                  %s461 = sadd.s32 1, %s457
                $region89: #{tpu_custom_call.1} parent=82 // loop_footer_branch
                  %456 = sbr.rel target = $region85
                $region90: #{tpu_custom_call.1} parent=82 // loop_exit
                  _
              $region83: #{tpu_custom_call.1} parent=67 // pred_fallthru
                _
              // Predicated region
              $region91: #{tpu_custom_call.1} parent=67 // pred_check
                _
              $region92: #{tpu_custom_call.1} parent=67 // pred_check_branch
                %469 = sbr.rel target = $region94
              $region93: #{tpu_custom_call.1} parent=67 // pred_region
                _
              $region94: #{tpu_custom_call.1} parent=67 // pred_fallthru
                _
            $region68: #{tpu_custom_call.1} parent=63 // pred_fallthru
              _
            // Predicated region
            $region69: #{tpu_custom_call.1} parent=63 // pred_check
              _
            $region70: #{tpu_custom_call.1} parent=63 // pred_check_branch
              %440 = sbr.rel target = $region72
            $region71: #{tpu_custom_call.1} parent=63 // pred_region
              loop: start=0, step=1, limit=1
              $region73: #{tpu_custom_call.1} parent=71 // loop_pre_header
                _
              $region74: #{tpu_custom_call.1} parent=71 // loop_header
                %s443 = sphi 0, %s447
                %p444 = scmp.ge.s32.totalorder %s443, 1
                %s448 = sphi %s434, %s434
                %s449 = sphi %s432, %s432
              $region75: #{tpu_custom_call.1} parent=71 // loop_header_branch
                %446 = sbr.rel (%p444) target = $region79
              $region76: #{tpu_custom_call.1} parent=71 // loop_body
                %v450 = vld [vmem:[%s448] sm:$0xff]
                %451 = vst [vmem:[%s449] sm:$0xff] %v450
                %v452 = vld [vmem:[%s448 + $0x10] sm:$0xff]
                %453 = vst [vmem:[%s449 + $0x8] sm:$0xff] %v452
              $region77: #{tpu_custom_call.1} parent=71 // loop_footer
                %s447 = sadd.s32 1, %s443
              $region78: #{tpu_custom_call.1} parent=71 // loop_footer_branch
                %442 = sbr.rel target = $region74
              $region79: #{tpu_custom_call.1} parent=71 // loop_exit
                _
            $region72: #{tpu_custom_call.1} parent=63 // pred_fallthru
              _
          $region64: #{tpu_custom_call.1} parent=59 // pred_fallthru
            _
          %470 = vnop
        $region60: #{tpu_custom_call.1} parent=51 // pred_fallthru
          _
      $region52: #{tpu_custom_call.1} parent=5 // pred_fallthru
        _
      %p471 = scmp.le.s32.totalorder 1, %s30
      %p472 = scmp.lt.s32.totalorder %s30, 5
      %p473 = pnand %p471, %p472
      %p474 = pneg %p473
      // Predicated region
      $region95: #{tpu_custom_call.1} parent=5 // pred_check
        _
      $region96: #{tpu_custom_call.1} parent=5 // pred_check_branch
        %476 = sbr.rel (%p473) target = $region98
      $region97: #{tpu_custom_call.1} parent=5 // pred_region
        %s477 = ssub.s32 %s30, 1
        %s478 = sand.u32 %s188, 1
        %s479 = sand.u32 %s188, 1
        %s480 = smul.addr %s479, 16
        %s481 = scalar_lea.vmem [#allocation5], %s480
        // Predicated region
        $region99: #{tpu_custom_call.1} parent=97 // pred_check
          %p482 = pneg %p201
        $region100: #{tpu_custom_call.1} parent=97 // pred_check_branch
          %484 = sbr.rel (%p482) target = $region102
        $region101: #{tpu_custom_call.1} parent=97 // pred_region
          _
        $region102: #{tpu_custom_call.1} parent=97 // pred_fallthru
          _
        %s485 = smul.u32 16, %s40
        %p486 = scmp.lt.s32.totalorder %s39, 1
        %s487 = scalar_select %p486, %s39, 1
        %p488 = scmp.lt.s32.totalorder %s485, 31
        %s489 = scalar_select %p488, %s485, 31
        %s490 = smul.addr %s487, 32
        %s491 = sadd.s32 %s489, %s490
        %s492 = smul.addr %s491, 8
        %s493 = scalar_lea.vmem %s1, %s492
        %p494 = pneg %p70
        %p495 = pneg %p67
        %p496 = pneg %p91
        %p497 = pneg %p88
        %p498 = pneg %p112
        %p499 = pneg %p109
        %p500 = pneg %p133
        %p501 = pneg %p130
        %p502 = pneg %p154
        %p503 = pneg %p151
        %p504 = pneg %p175
        %p505 = pneg %p172
        %s506 = sand.u32 %s188, 1
        %s507 = sand.u32 %s188, 1
        %s508 = smul.addr %s507, 16
        %s509 = scalar_lea.vmem [#allocation5], %s508
        %p510 = pneg %p201
        %p511 = pneg %p198
        %p512 = pneg %p222
        %p513 = pneg %p219
        %p514 = pneg %p243
        %p515 = pneg %p240
        %p516 = pneg %p264
        %p517 = pneg %p261
        %p518 = pneg %p285
        %p519 = pneg %p282
        %p520 = pneg %p313
        %p521 = pneg %p310
        %s522 = smul.u32 16, %s40
        %p523 = scmp.lt.s32.totalorder %s39, 1
        %s524 = scalar_select %p523, %s39, 1
        %p525 = scmp.lt.s32.totalorder %s522, 31
        %s526 = scalar_select %p525, %s522, 31
        %s527 = smul.addr %s524, 32
        %s528 = sadd.s32 %s526, %s527
        %s529 = smul.addr %s528, 8
        %s530 = scalar_lea.vmem %s12, %s529
        %p531 = pneg %p341
        %p532 = pneg %p338
        %s533 = smul.u32 16, %s40
        %p534 = scmp.lt.s32.totalorder %s39, 1
        %s535 = scalar_select %p534, %s39, 1
        %p536 = scmp.lt.s32.totalorder %s533, 31
        %s537 = scalar_select %p536, %s533, 31
        %s538 = smul.addr %s535, 32
        %s539 = sadd.s32 %s537, %s538
        %s540 = smul.addr %s539, 8
        %s541 = scalar_lea.vmem %s13, %s540
        %p542 = pneg %p367
        %p543 = pneg %p364
        %s544 = sand.u32 %s354, 1
        %s545 = scalar_lea.sflag [#allocation7], %s544
        %s546 = sand.u32 %s354, 1
        %s547 = smul.addr %s546, 8
        %s548 = scalar_lea.vmem [#allocation6], %s547
        %s549 = smul.u32 16, %s40
        %p550 = scmp.lt.s32.totalorder %s39, 1
        %s551 = scalar_select %p550, %s39, 1
        %p552 = scmp.lt.s32.totalorder %s549, 31
        %s553 = scalar_select %p552, %s549, 31
        %s554 = smul.addr %s551, 32
        %s555 = sadd.s32 %s553, %s554
        %s556 = smul.addr %s555, 8
        %s557 = scalar_lea.vmem %s1, %s556
        %s558 = smul.u32 16, %s40
        %s559 = smul.u32 16, %s40
        %p560 = scmp.lt.s32.totalorder %s39, 1
        %s561 = scalar_select %p560, %s39, 1
        %p562 = scmp.lt.s32.totalorder %s559, 31
        %s563 = scalar_select %p562, %s559, 31
        %s564 = smul.addr %s561, 32
        %s565 = sadd.s32 %s563, %s564
        %s566 = smul.addr %s565, 8
        %s567 = scalar_lea.vmem %s12, %s566
        %s568 = smul.u32 16, %s40
        %s569 = smul.u32 16, %s40
        %p570 = scmp.lt.s32.totalorder %s39, 1
        %s571 = scalar_select %p570, %s39, 1
        %p572 = scmp.lt.s32.totalorder %s569, 31
        %s573 = scalar_select %p572, %s569, 31
        %s574 = smul.addr %s571, 32
        %s575 = sadd.s32 %s573, %s574
        %s576 = smul.addr %s575, 8
        %s577 = scalar_lea.vmem %s13, %s576
        %s578 = smul.u32 16, %s40
        %s579 = sld [smem:[#allocation4 + %s39]]
        %s580 = ssub.s32 %s579, 1
        %v581 = vld [vmem:[%s557] sm:$0xff]
        %v582 = vld [vmem:[%s557 + $0x8] sm:$0xff]
        %v583 = vld [vmem:[%s557 + $0x10] sm:$0xff]
        %v584 = vld [vmem:[%s557 + $0x18] sm:$0xff]
        %v585 = vld [vmem:[%s557 + $0x20] sm:$0xff]
        %v586 = vld [vmem:[%s557 + $0x28] sm:$0xff]
        %v587 = vld [vmem:[%s557 + $0x30] sm:$0xff]
        %v588 = vld [vmem:[%s557 + $0x38] sm:$0xff]
        %v589 = vld [vmem:[%s557 + $0x40] sm:$0xff]
        %v590 = vld [vmem:[%s557 + $0x48] sm:$0xff]
        %v591 = vld [vmem:[%s557 + $0x50] sm:$0xff]
        %v592 = vld [vmem:[%s557 + $0x58] sm:$0xff]
        %v593 = vld [vmem:[%s557 + $0x60] sm:$0xff]
        %v594 = vld [vmem:[%s557 + $0x68] sm:$0xff]
        %v595 = vld [vmem:[%s557 + $0x70] sm:$0xff]
        %v596 = vld [vmem:[%s557 + $0x78] sm:$0xff]
        %v597 = vld [vmem:[%s2] sm:$0xff]
        %v598 = vld [vmem:[%s2 + $0x8] sm:$0xff]
        %v599 = vld [vmem:[%s2 + $0x10] sm:$0xff]
        %v600 = vld [vmem:[%s2 + $0x18] sm:$0xff]
        %vm601 = vcmask 261120
        %v603 = vsel %vm601, %v581, 0
        %v606 = vsel %vm601, %v582, 0
        %v609 = vsel %vm601, %v583, 0
        %v612 = vsel %vm601, %v584, 0
        %v615 = vsel %vm601, %v585, 0
        %v618 = vsel %vm601, %v586, 0
        %v621 = vsel %vm601, %v587, 0
        %v624 = vsel %vm601, %v588, 0
        %v627 = vsel %vm601, %v589, 0
        %v630 = vsel %vm601, %v590, 0
        %v633 = vsel %vm601, %v591, 0
        %v636 = vsel %vm601, %v592, 0
        %v639 = vsel %vm601, %v593, 0
        %v642 = vsel %vm601, %v594, 0
        %v645 = vsel %vm601, %v595, 0
        %v648 = vsel %vm601, %v596, 0
        %650 = vmatprep.subr.mxu0 0.0
        %651 = vmatpush1.msra.mxu0 %v597
        %652 = vmatprep.subr.mxu0 0.0
        %653 = vmatpush1.msra.mxu0 %v598
        %654 = vmatprep.subr.mxu0 0.0
        %655 = vmatpush1.msra.mxu0 %v599
        %656 = vmatprep.subr.mxu0 0.0
        %657 = vmatpush1.msra.mxu0 %v600
        %658 = vmatprep.subr.mxu0 0.0
        %659 = vmatpush1.msra.mxu0 0.0
        %660 = vmatprep.subr.mxu0 0.0
        %661 = vmatpush1.msra.mxu0 0.0
        %662 = vmatprep.subr.mxu0 0.0
        %663 = vmatpush1.msra.mxu0 0.0
        %664 = vmatprep.subr.mxu0 0.0
        %665 = vmatpush1.msra.mxu0 0.0
        %666 = vmatprep.subr.mxu0 0.0
        %667 = vmatpush1.msra.mxu0 0.0
        %668 = vmatprep.subr.mxu0 0.0
        %669 = vmatpush1.msra.mxu0 0.0
        %670 = vmatprep.subr.mxu0 0.0
        %671 = vmatpush1.msra.mxu0 0.0
        %672 = vmatprep.subr.mxu0 0.0
        %673 = vmatpush1.msra.mxu0 0.0
        %674 = vmatprep.subr.mxu0 0.0
        %675 = vmatpush1.msra.mxu0 0.0
        %676 = vmatprep.subr.mxu0 0.0
        %677 = vmatpush1.msra.mxu0 0.0
        %678 = vmatprep.subr.mxu0 0.0
        %679 = vmatpush1.msra.mxu0 0.0
        %680 = vmatprep.subr.mxu0 0.0
        %681 = vmatpush1.msra.mxu0 0.0
        %682 = vmatprep.subr.mxu0 0.0
        %683 = vmatpush1.msra.mxu0 0.0
        %684 = vmatprep.subr.mxu0 0.0
        %685 = vmatpush1.msra.mxu0 0.0
        %686 = vmatprep.subr.mxu0 0.0
        %687 = vmatpush1.msra.mxu0 0.0
        %688 = vmatprep.subr.mxu0 0.0
        %689 = vmatpush1.msra.mxu0 0.0
        %690 = vmatprep.subr.mxu0 0.0
        %691 = vmatpush1.msra.mxu0 0.0
        %692 = vmatprep.subr.mxu0 0.0
        %693 = vmatpush1.msra.mxu0 0.0
        %694 = vmatprep.subr.mxu0 0.0
        %695 = vmatpush1.msra.mxu0 0.0
        %696 = vmatprep.subr.mxu0 0.0
        %697 = vmatpush1.msra.mxu0 0.0
        %698 = vmatprep.subr.mxu0 0.0
        %699 = vmatpush1.msra.mxu0 0.0
        %700 = vmatprep.subr.mxu0 0.0
        %701 = vmatpush1.msra.mxu0 0.0
        %702 = vmatprep.subr.mxu0 0.0
        %703 = vmatpush1.msra.mxu0 0.0
        %704 = vmatprep.subr.mxu0 0.0
        %705 = vmatpush1.msra.mxu0 0.0
        %706 = vmatprep.subr.mxu0 0.0
        %707 = vmatpush1.msra.mxu0 0.0
        %708 = vmatprep.subr.mxu0 0.0
        %709 = vmatpush1.msra.mxu0 0.0
        %710 = vmatprep.subr.mxu0 0.0
        %711 = vmatpush1.msra.mxu0 0.0
        %712 = vmatprep.subr.mxu0 0.0
        %713 = vmatpush1.msra.mxu0 0.0
        %714 = vmatprep.mubr.f32.mxu0 0.0
        %715 = vmatmul.mubr.f32.gmra.mrb[0].mxu0 %v603
        %v716 = vpop.f32.mrb[0].mxu0
        %v717 = vadd.f32 0.0, %v716
        %v718 = vpop.f32.mrb[0].mxu0
        %719 = vmatprep.mubr.f32.mxu0 0.0
        %720 = vmatmul.mubr.f32.gmra.mrb[0].mxu0 %v606
        %v721 = vpop.f32.mrb[0].mxu0
        %v722 = vadd.f32 0.0, %v721
        %v723 = vpop.f32.mrb[0].mxu0
        %724 = vmatprep.mubr.f32.mxu0 0.0
        %725 = vmatmul.mubr.f32.gmra.mrb[0].mxu0 %v609
        %v726 = vpop.f32.mrb[0].mxu0
        %v727 = vadd.f32 0.0, %v726
        %v728 = vpop.f32.mrb[0].mxu0
        %729 = vmatprep.mubr.f32.mxu0 0.0
        %730 = vmatmul.mubr.f32.gmra.mrb[0].mxu0 %v612
        %v731 = vpop.f32.mrb[0].mxu0
        %v732 = vadd.f32 0.0, %v731
        %v733 = vpop.f32.mrb[0].mxu0
        %734 = vmatprep.mubr.f32.mxu0 0.0
        %735 = vmatmul.mubr.f32.gmra.mrb[0].mxu0 %v615
        %v736 = vpop.f32.mrb[0].mxu0
        %v737 = vadd.f32 0.0, %v736
        %v738 = vpop.f32.mrb[0].mxu0
        %739 = vmatprep.mubr.f32.mxu0 0.0
        %740 = vmatmul.mubr.f32.gmra.mrb[0].mxu0 %v618
        %v741 = vpop.f32.mrb[0].mxu0
        %v742 = vadd.f32 0.0, %v741
        %v743 = vpop.f32.mrb[0].mxu0
        %744 = vmatprep.mubr.f32.mxu0 0.0
        %745 = vmatmul.mubr.f32.gmra.mrb[0].mxu0 %v621
        %v746 = vpop.f32.mrb[0].mxu0
        %v747 = vadd.f32 0.0, %v746
        %v748 = vpop.f32.mrb[0].mxu0
        %749 = vmatprep.mubr.f32.mxu0 0.0
        %750 = vmatmul.mubr.f32.gmra.mrb[0].mxu0 %v624
        %v751 = vpop.f32.mrb[0].mxu0
        %v752 = vadd.f32 0.0, %v751
        %v753 = vpop.f32.mrb[0].mxu0
        %754 = vmatprep.mubr.f32.mxu0 0.0
        %755 = vmatmul.mubr.f32.gmra.mrb[0].mxu0 %v627
        %v756 = vpop.f32.mrb[0].mxu0
        %v757 = vadd.f32 0.0, %v756
        %v758 = vpop.f32.mrb[0].mxu0
        %759 = vmatprep.mubr.f32.mxu0 0.0
        %760 = vmatmul.mubr.f32.gmra.mrb[0].mxu0 %v630
        %v761 = vpop.f32.mrb[0].mxu0
        %v762 = vadd.f32 0.0, %v761
        %v763 = vpop.f32.mrb[0].mxu0
        %764 = vmatprep.mubr.f32.mxu0 0.0
        %765 = vmatmul.mubr.f32.gmra.mrb[0].mxu0 %v633
        %v766 = vpop.f32.mrb[0].mxu0
        %v767 = vadd.f32 0.0, %v766
        %v768 = vpop.f32.mrb[0].mxu0
        %769 = vmatprep.mubr.f32.mxu0 0.0
        %770 = vmatmul.mubr.f32.gmra.mrb[0].mxu0 %v636
        %v771 = vpop.f32.mrb[0].mxu0
        %v772 = vadd.f32 0.0, %v771
        %v773 = vpop.f32.mrb[0].mxu0
        %774 = vmatprep.mubr.f32.mxu0 0.0
        %775 = vmatmul.mubr.f32.gmra.mrb[0].mxu0 %v639
        %v776 = vpop.f32.mrb[0].mxu0
        %v777 = vadd.f32 0.0, %v776
        %v778 = vpop.f32.mrb[0].mxu0
        %779 = vmatprep.mubr.f32.mxu0 0.0
        %780 = vmatmul.mubr.f32.gmra.mrb[0].mxu0 %v642
        %v781 = vpop.f32.mrb[0].mxu0
        %v782 = vadd.f32 0.0, %v781
        %v783 = vpop.f32.mrb[0].mxu0
        %784 = vmatprep.mubr.f32.mxu0 0.0
        %785 = vmatmul.mubr.f32.gmra.mrb[0].mxu0 %v645
        %v786 = vpop.f32.mrb[0].mxu0
        %v787 = vadd.f32 0.0, %v786
        %v788 = vpop.f32.mrb[0].mxu0
        %789 = vmatprep.mubr.f32.mxu0 0.0
        %790 = vmatmul.mubr.f32.gmra.mrb[0].mxu0 %v648
        %v791 = vpop.f32.mrb[0].mxu0
        %v792 = vadd.f32 0.0, %v791
        %v793 = vpop.f32.mrb[0].mxu0
        %794 = vdwg.mxu0
        %p795 = scmp.eq.s32.totalorder %s40, 0
        // Predicated region
        $region103: #{tpu_custom_call.1} parent=97 // pred_check
          %p796 = pneg %p795
        $region104: #{tpu_custom_call.1} parent=97 // pred_check_branch
          %798 = sbr.rel (%p796) target = $region106
        $region105: #{tpu_custom_call.1} parent=97 // pred_region
          %799 = vst [vmem:[#allocation2] sm:$0xff] 0.0
          %800 = vst [vmem:[#allocation2 + $0x8] sm:$0xff] 0.0
        $region106: #{tpu_custom_call.1} parent=97 // pred_fallthru
          _
        %v801 = vld [vmem:[%s481] sm:$0xff]
        %v802 = vld [vmem:[%s481 + $0x8] sm:$0xff]
        %804 = vset.pattern.permute.xlu0 0
        %805 = vperm.xlu0 %804, %v717
        %v806 = vpop.permute.xlu0 %805
        %809 = vset.pattern.permute.xlu0 0
        %810 = vperm.xlu0 %809, %v722
        %v811 = vpop.permute.xlu0 %810
        %814 = vset.pattern.permute.xlu0 0
        %815 = vperm.xlu0 %814, %v727
        %v816 = vpop.permute.xlu0 %815
        %819 = vset.pattern.permute.xlu0 0
        %820 = vperm.xlu0 %819, %v732
        %v821 = vpop.permute.xlu0 %820
        %824 = vset.pattern.permute.xlu0 0
        %825 = vperm.xlu0 %824, %v737
        %v826 = vpop.permute.xlu0 %825
        %829 = vset.pattern.permute.xlu0 0
        %830 = vperm.xlu0 %829, %v742
        %v831 = vpop.permute.xlu0 %830
        %834 = vset.pattern.permute.xlu0 0
        %835 = vperm.xlu0 %834, %v747
        %v836 = vpop.permute.xlu0 %835
        %839 = vset.pattern.permute.xlu0 0
        %840 = vperm.xlu0 %839, %v752
        %v841 = vpop.permute.xlu0 %840
        %844 = vset.pattern.permute.xlu0 0
        %845 = vperm.xlu0 %844, %v757
        %v846 = vpop.permute.xlu0 %845
        %849 = vset.pattern.permute.xlu0 0
        %850 = vperm.xlu0 %849, %v762
        %v851 = vpop.permute.xlu0 %850
        %854 = vset.pattern.permute.xlu0 0
        %855 = vperm.xlu0 %854, %v767
        %v856 = vpop.permute.xlu0 %855
        %859 = vset.pattern.permute.xlu0 0
        %860 = vperm.xlu0 %859, %v772
        %v861 = vpop.permute.xlu0 %860
        %864 = vset.pattern.permute.xlu0 0
        %865 = vperm.xlu0 %864, %v777
        %v866 = vpop.permute.xlu0 %865
        %869 = vset.pattern.permute.xlu0 0
        %870 = vperm.xlu0 %869, %v782
        %v871 = vpop.permute.xlu0 %870
        %874 = vset.pattern.permute.xlu0 0
        %875 = vperm.xlu0 %874, %v787
        %v876 = vpop.permute.xlu0 %875
        %879 = vset.pattern.permute.xlu0 0
        %880 = vperm.xlu0 %879, %v792
        %v881 = vpop.permute.xlu0 %880
        %v883 = vmul.f32 %v581, %v806
        %v884 = vmul.f32 %v582, %v811
        %v885 = vmul.f32 %v583, %v816
        %v886 = vmul.f32 %v584, %v821
        %v887 = vmul.f32 %v585, %v826
        %v888 = vmul.f32 %v586, %v831
        %v889 = vmul.f32 %v587, %v836
        %v890 = vmul.f32 %v588, %v841
        %v891 = vmul.f32 %v589, %v846
        %v892 = vmul.f32 %v590, %v851
        %v893 = vmul.f32 %v591, %v856
        %v894 = vmul.f32 %v592, %v861
        %v895 = vmul.f32 %v593, %v866
        %v896 = vmul.f32 %v594, %v871
        %v897 = vmul.f32 %v595, %v876
        %v898 = vmul.f32 %v596, %v881
        %v899 = vadd.f32 %v581, %v883
        %v900 = vadd.f32 %v582, %v884
        %v901 = vadd.f32 %v583, %v885
        %v902 = vadd.f32 %v584, %v886
        %v903 = vadd.f32 %v585, %v887
        %v904 = vadd.f32 %v586, %v888
        %v905 = vadd.f32 %v587, %v889
        %v906 = vadd.f32 %v588, %v890
        %v907 = vadd.f32 %v589, %v891
        %v908 = vadd.f32 %v590, %v892
        %v909 = vadd.f32 %v591, %v893
        %v910 = vadd.f32 %v592, %v894
        %v911 = vadd.f32 %v593, %v895
        %v912 = vadd.f32 %v594, %v896
        %v913 = vadd.f32 %v595, %v897
        %v914 = vadd.f32 %v596, %v898
        %915 = vmatprep.subr.mxu0 0.0
        %916 = vmatpush1.msra.mxu0 %v899
        %917 = vmatprep.subr.mxu0 0.0
        %918 = vmatpush1.msra.mxu0 %v900
        %919 = vmatprep.subr.mxu0 0.0
        %920 = vmatpush1.msra.mxu0 %v901
        %921 = vmatprep.subr.mxu0 0.0
        %922 = vmatpush1.msra.mxu0 %v902
        %923 = vmatprep.subr.mxu0 0.0
        %924 = vmatpush1.msra.mxu0 %v903
        %925 = vmatprep.subr.mxu0 0.0
        %926 = vmatpush1.msra.mxu0 %v904
        %927 = vmatprep.subr.mxu0 0.0
        %928 = vmatpush1.msra.mxu0 %v905
        %929 = vmatprep.subr.mxu0 0.0
        %930 = vmatpush1.msra.mxu0 %v906
        %931 = vmatprep.subr.mxu0 0.0
        %932 = vmatpush1.msra.mxu0 %v907
        %933 = vmatprep.subr.mxu0 0.0
        %934 = vmatpush1.msra.mxu0 %v908
        %935 = vmatprep.subr.mxu0 0.0
        %936 = vmatpush1.msra.mxu0 %v909
        %937 = vmatprep.subr.mxu0 0.0
        %938 = vmatpush1.msra.mxu0 %v910
        %939 = vmatprep.subr.mxu0 0.0
        %940 = vmatpush1.msra.mxu0 %v911
        %941 = vmatprep.subr.mxu0 0.0
        %942 = vmatpush1.msra.mxu0 %v912
        %943 = vmatprep.subr.mxu0 0.0
        %944 = vmatpush1.msra.mxu0 %v913
        %945 = vmatprep.subr.mxu0 0.0
        %946 = vmatpush1.msra.mxu0 %v914
        %947 = vmatprep.subr.mxu0 0.0
        %948 = vmatpush1.msra.mxu0 0.0
        %949 = vmatprep.subr.mxu0 0.0
        %950 = vmatpush1.msra.mxu0 0.0
        %951 = vmatprep.subr.mxu0 0.0
        %952 = vmatpush1.msra.mxu0 0.0
        %953 = vmatprep.subr.mxu0 0.0
        %954 = vmatpush1.msra.mxu0 0.0
        %955 = vmatprep.subr.mxu0 0.0
        %956 = vmatpush1.msra.mxu0 0.0
        %957 = vmatprep.subr.mxu0 0.0
        %958 = vmatpush1.msra.mxu0 0.0
        %959 = vmatprep.subr.mxu0 0.0
        %960 = vmatpush1.msra.mxu0 0.0
        %961 = vmatprep.subr.mxu0 0.0
        %962 = vmatpush1.msra.mxu0 0.0
        %963 = vmatprep.subr.mxu0 0.0
        %964 = vmatpush1.msra.mxu0 0.0
        %965 = vmatprep.subr.mxu0 0.0
        %966 = vmatpush1.msra.mxu0 0.0
        %967 = vmatprep.subr.mxu0 0.0
        %968 = vmatpush1.msra.mxu0 0.0
        %969 = vmatprep.subr.mxu0 0.0
        %970 = vmatpush1.msra.mxu0 0.0
        %971 = vmatprep.subr.mxu0 0.0
        %972 = vmatpush1.msra.mxu0 0.0
        %973 = vmatprep.subr.mxu0 0.0
        %974 = vmatpush1.msra.mxu0 0.0
        %975 = vmatprep.subr.mxu0 0.0
        %976 = vmatpush1.msra.mxu0 0.0
        %977 = vmatprep.subr.mxu0 0.0
        %978 = vmatpush1.msra.mxu0 0.0
        %979 = vmatprep.mubr.f32.mxu0 0.0
        %980 = vmatmul.mubr.f32.gmra.mrb[0].mxu0 %v801
        %v981 = vpop.f32.mrb[0].mxu0
        %v982 = vadd.f32 0.0, %v981
        %v983 = vpop.f32.mrb[0].mxu0
        %984 = vmatprep.mubr.f32.mxu0 0.0
        %985 = vmatmul.mubr.f32.gmra.mrb[0].mxu0 %v802
        %v986 = vpop.f32.mrb[0].mxu0
        %v987 = vadd.f32 0.0, %v986
        %v988 = vpop.f32.mrb[0].mxu0
        %989 = vdwg.mxu0
        %990 = vset.pattern.permute.xlu0 1
        %991 = vperm.xlu0 %990, %v717
        %v992 = vpop.permute.xlu0 %991
        %994 = vset.pattern.permute.xlu0 1
        %995 = vperm.xlu0 %994, %v722
        %v996 = vpop.permute.xlu0 %995
        %998 = vset.pattern.permute.xlu0 1
        %999 = vperm.xlu0 %998, %v727
        %v1000 = vpop.permute.xlu0 %999
        %1002 = vset.pattern.permute.xlu0 1
        %1003 = vperm.xlu0 %1002, %v732
        %v1004 = vpop.permute.xlu0 %1003
        %1006 = vset.pattern.permute.xlu0 1
        %1007 = vperm.xlu0 %1006, %v737
        %v1008 = vpop.permute.xlu0 %1007
        %1010 = vset.pattern.permute.xlu0 1
        %1011 = vperm.xlu0 %1010, %v742
        %v1012 = vpop.permute.xlu0 %1011
        %1014 = vset.pattern.permute.xlu0 1
        %1015 = vperm.xlu0 %1014, %v747
        %v1016 = vpop.permute.xlu0 %1015
        %1018 = vset.pattern.permute.xlu0 1
        %1019 = vperm.xlu0 %1018, %v752
        %v1020 = vpop.permute.xlu0 %1019
        %1022 = vset.pattern.permute.xlu0 1
        %1023 = vperm.xlu0 %1022, %v757
        %v1024 = vpop.permute.xlu0 %1023
        %1026 = vset.pattern.permute.xlu0 1
        %1027 = vperm.xlu0 %1026, %v762
        %v1028 = vpop.permute.xlu0 %1027
        %1030 = vset.pattern.permute.xlu0 1
        %1031 = vperm.xlu0 %1030, %v767
        %v1032 = vpop.permute.xlu0 %1031
        %1034 = vset.pattern.permute.xlu0 1
        %1035 = vperm.xlu0 %1034, %v772
        %v1036 = vpop.permute.xlu0 %1035
        %1038 = vset.pattern.permute.xlu0 1
        %1039 = vperm.xlu0 %1038, %v777
        %v1040 = vpop.permute.xlu0 %1039
        %1042 = vset.pattern.permute.xlu0 1
        %1043 = vperm.xlu0 %1042, %v782
        %v1044 = vpop.permute.xlu0 %1043
        %1046 = vset.pattern.permute.xlu0 1
        %1047 = vperm.xlu0 %1046, %v787
        %v1048 = vpop.permute.xlu0 %1047
        %1050 = vset.pattern.permute.xlu0 1
        %1051 = vperm.xlu0 %1050, %v792
        %v1052 = vpop.permute.xlu0 %1051
        %v1054 = vmul.f32 %v581, %v992
        %v1055 = vmul.f32 %v582, %v996
        %v1056 = vmul.f32 %v583, %v1000
        %v1057 = vmul.f32 %v584, %v1004
        %v1058 = vmul.f32 %v585, %v1008
        %v1059 = vmul.f32 %v586, %v1012
        %v1060 = vmul.f32 %v587, %v1016
        %v1061 = vmul.f32 %v588, %v1020
        %v1062 = vmul.f32 %v589, %v1024
        %v1063 = vmul.f32 %v590, %v1028
        %v1064 = vmul.f32 %v591, %v1032
        %v1065 = vmul.f32 %v592, %v1036
        %v1066 = vmul.f32 %v593, %v1040
        %v1067 = vmul.f32 %v594, %v1044
        %v1068 = vmul.f32 %v595, %v1048
        %v1069 = vmul.f32 %v596, %v1052
        %v1070 = vadd.f32 %v581, %v1054
        %v1071 = vadd.f32 %v582, %v1055
        %v1072 = vadd.f32 %v583, %v1056
        %v1073 = vadd.f32 %v584, %v1057
        %v1074 = vadd.f32 %v585, %v1058
        %v1075 = vadd.f32 %v586, %v1059
        %v1076 = vadd.f32 %v587, %v1060
        %v1077 = vadd.f32 %v588, %v1061
        %v1078 = vadd.f32 %v589, %v1062
        %v1079 = vadd.f32 %v590, %v1063
        %v1080 = vadd.f32 %v591, %v1064
        %v1081 = vadd.f32 %v592, %v1065
        %v1082 = vadd.f32 %v593, %v1066
        %v1083 = vadd.f32 %v594, %v1067
        %v1084 = vadd.f32 %v595, %v1068
        %v1085 = vadd.f32 %v596, %v1069
        %1086 = vmatprep.subr.mxu0 0.0
        %1087 = vmatpush1.msra.mxu0 %v1070
        %1088 = vmatprep.subr.mxu0 0.0
        %1089 = vmatpush1.msra.mxu0 %v1071
        %1090 = vmatprep.subr.mxu0 0.0
        %1091 = vmatpush1.msra.mxu0 %v1072
        %1092 = vmatprep.subr.mxu0 0.0
        %1093 = vmatpush1.msra.mxu0 %v1073
        %1094 = vmatprep.subr.mxu0 0.0
        %1095 = vmatpush1.msra.mxu0 %v1074
        %1096 = vmatprep.subr.mxu0 0.0
        %1097 = vmatpush1.msra.mxu0 %v1075
        %1098 = vmatprep.subr.mxu0 0.0
        %1099 = vmatpush1.msra.mxu0 %v1076
        %1100 = vmatprep.subr.mxu0 0.0
        %1101 = vmatpush1.msra.mxu0 %v1077
        %1102 = vmatprep.subr.mxu0 0.0
        %1103 = vmatpush1.msra.mxu0 %v1078
        %1104 = vmatprep.subr.mxu0 0.0
        %1105 = vmatpush1.msra.mxu0 %v1079
        %1106 = vmatprep.subr.mxu0 0.0
        %1107 = vmatpush1.msra.mxu0 %v1080
        %1108 = vmatprep.subr.mxu0 0.0
        %1109 = vmatpush1.msra.mxu0 %v1081
        %1110 = vmatprep.subr.mxu0 0.0
        %1111 = vmatpush1.msra.mxu0 %v1082
        %1112 = vmatprep.subr.mxu0 0.0
        %1113 = vmatpush1.msra.mxu0 %v1083
        %1114 = vmatprep.subr.mxu0 0.0
        %1115 = vmatpush1.msra.mxu0 %v1084
        %1116 = vmatprep.subr.mxu0 0.0
        %1117 = vmatpush1.msra.mxu0 %v1085
        %1118 = vmatprep.subr.mxu0 0.0
        %1119 = vmatpush1.msra.mxu0 0.0
        %1120 = vmatprep.subr.mxu0 0.0
        %1121 = vmatpush1.msra.mxu0 0.0
        %1122 = vmatprep.subr.mxu0 0.0
        %1123 = vmatpush1.msra.mxu0 0.0
        %1124 = vmatprep.subr.mxu0 0.0
        %1125 = vmatpush1.msra.mxu0 0.0
        %1126 = vmatprep.subr.mxu0 0.0
        %1127 = vmatpush1.msra.mxu0 0.0
        %1128 = vmatprep.subr.mxu0 0.0
        %1129 = vmatpush1.msra.mxu0 0.0
        %1130 = vmatprep.subr.mxu0 0.0
        %1131 = vmatpush1.msra.mxu0 0.0
        %1132 = vmatprep.subr.mxu0 0.0
        %1133 = vmatpush1.msra.mxu0 0.0
        %1134 = vmatprep.subr.mxu0 0.0
        %1135 = vmatpush1.msra.mxu0 0.0
        %1136 = vmatprep.subr.mxu0 0.0
        %1137 = vmatpush1.msra.mxu0 0.0
        %1138 = vmatprep.subr.mxu0 0.0
        %1139 = vmatpush1.msra.mxu0 0.0
        %1140 = vmatprep.subr.mxu0 0.0
        %1141 = vmatpush1.msra.mxu0 0.0
        %1142 = vmatprep.subr.mxu0 0.0
        %1143 = vmatpush1.msra.mxu0 0.0
        %1144 = vmatprep.subr.mxu0 0.0
        %1145 = vmatpush1.msra.mxu0 0.0
        %1146 = vmatprep.subr.mxu0 0.0
        %1147 = vmatpush1.msra.mxu0 0.0
        %1148 = vmatprep.subr.mxu0 0.0
        %1149 = vmatpush1.msra.mxu0 0.0
        %1150 = vmatprep.mubr.f32.mxu0 0.0
        %1151 = vmatmul.mubr.f32.gmra.mrb[0].mxu0 %v801
        %v1152 = vpop.f32.mrb[0].mxu0
        %v1153 = vadd.f32 0.0, %v1152
        %v1154 = vpop.f32.mrb[0].mxu0
        %1155 = vmatprep.mubr.f32.mxu0 0.0
        %1156 = vmatmul.mubr.f32.gmra.mrb[0].mxu0 %v802
        %v1157 = vpop.f32.mrb[0].mxu0
        %v1158 = vadd.f32 0.0, %v1157
        %v1159 = vpop.f32.mrb[0].mxu0
        %1160 = vdwg.mxu0
        %1161 = vset.pattern.permute.xlu0 2
        %1162 = vperm.xlu0 %1161, %v717
        %v1163 = vpop.permute.xlu0 %1162
        %1165 = vset.pattern.permute.xlu0 2
        %1166 = vperm.xlu0 %1165, %v722
        %v1167 = vpop.permute.xlu0 %1166
        %1169 = vset.pattern.permute.xlu0 2
        %1170 = vperm.xlu0 %1169, %v727
        %v1171 = vpop.permute.xlu0 %1170
        %1173 = vset.pattern.permute.xlu0 2
        %1174 = vperm.xlu0 %1173, %v732
        %v1175 = vpop.permute.xlu0 %1174
        %1177 = vset.pattern.permute.xlu0 2
        %1178 = vperm.xlu0 %1177, %v737
        %v1179 = vpop.permute.xlu0 %1178
        %1181 = vset.pattern.permute.xlu0 2
        %1182 = vperm.xlu0 %1181, %v742
        %v1183 = vpop.permute.xlu0 %1182
        %1185 = vset.pattern.permute.xlu0 2
        %1186 = vperm.xlu0 %1185, %v747
        %v1187 = vpop.permute.xlu0 %1186
        %1189 = vset.pattern.permute.xlu0 2
        %1190 = vperm.xlu0 %1189, %v752
        %v1191 = vpop.permute.xlu0 %1190
        %1193 = vset.pattern.permute.xlu0 2
        %1194 = vperm.xlu0 %1193, %v757
        %v1195 = vpop.permute.xlu0 %1194
        %1197 = vset.pattern.permute.xlu0 2
        %1198 = vperm.xlu0 %1197, %v762
        %v1199 = vpop.permute.xlu0 %1198
        %1201 = vset.pattern.permute.xlu0 2
        %1202 = vperm.xlu0 %1201, %v767
        %v1203 = vpop.permute.xlu0 %1202
        %1205 = vset.pattern.permute.xlu0 2
        %1206 = vperm.xlu0 %1205, %v772
        %v1207 = vpop.permute.xlu0 %1206
        %1209 = vset.pattern.permute.xlu0 2
        %1210 = vperm.xlu0 %1209, %v777
        %v1211 = vpop.permute.xlu0 %1210
        %1213 = vset.pattern.permute.xlu0 2
        %1214 = vperm.xlu0 %1213, %v782
        %v1215 = vpop.permute.xlu0 %1214
        %1217 = vset.pattern.permute.xlu0 2
        %1218 = vperm.xlu0 %1217, %v787
        %v1219 = vpop.permute.xlu0 %1218
        %1221 = vset.pattern.permute.xlu0 2
        %1222 = vperm.xlu0 %1221, %v792
        %v1223 = vpop.permute.xlu0 %1222
        %v1225 = vmul.f32 %v581, %v1163
        %v1226 = vmul.f32 %v582, %v1167
        %v1227 = vmul.f32 %v583, %v1171
        %v1228 = vmul.f32 %v584, %v1175
        %v1229 = vmul.f32 %v585, %v1179
        %v1230 = vmul.f32 %v586, %v1183
        %v1231 = vmul.f32 %v587, %v1187
        %v1232 = vmul.f32 %v588, %v1191
        %v1233 = vmul.f32 %v589, %v1195
        %v1234 = vmul.f32 %v590, %v1199
        %v1235 = vmul.f32 %v591, %v1203
        %v1236 = vmul.f32 %v592, %v1207
        %v1237 = vmul.f32 %v593, %v1211
        %v1238 = vmul.f32 %v594, %v1215
        %v1239 = vmul.f32 %v595, %v1219
        %v1240 = vmul.f32 %v596, %v1223
        %v1241 = vadd.f32 %v581, %v1225
        %v1242 = vadd.f32 %v582, %v1226
        %v1243 = vadd.f32 %v583, %v1227
        %v1244 = vadd.f32 %v584, %v1228
        %v1245 = vadd.f32 %v585, %v1229
        %v1246 = vadd.f32 %v586, %v1230
        %v1247 = vadd.f32 %v587, %v1231
        %v1248 = vadd.f32 %v588, %v1232
        %v1249 = vadd.f32 %v589, %v1233
        %v1250 = vadd.f32 %v590, %v1234
        %v1251 = vadd.f32 %v591, %v1235
        %v1252 = vadd.f32 %v592, %v1236
        %v1253 = vadd.f32 %v593, %v1237
        %v1254 = vadd.f32 %v594, %v1238
        %v1255 = vadd.f32 %v595, %v1239
        %v1256 = vadd.f32 %v596, %v1240
        %1257 = vmatprep.subr.mxu0 0.0
        %1258 = vmatpush1.msra.mxu0 %v1241
        %1259 = vmatprep.subr.mxu0 0.0
        %1260 = vmatpush1.msra.mxu0 %v1242
        %1261 = vmatprep.subr.mxu0 0.0
        %1262 = vmatpush1.msra.mxu0 %v1243
        %1263 = vmatprep.subr.mxu0 0.0
        %1264 = vmatpush1.msra.mxu0 %v1244
        %1265 = vmatprep.subr.mxu0 0.0
        %1266 = vmatpush1.msra.mxu0 %v1245
        %1267 = vmatprep.subr.mxu0 0.0
        %1268 = vmatpush1.msra.mxu0 %v1246
        %1269 = vmatprep.subr.mxu0 0.0
        %1270 = vmatpush1.msra.mxu0 %v1247
        %1271 = vmatprep.subr.mxu0 0.0
        %1272 = vmatpush1.msra.mxu0 %v1248
        %1273 = vmatprep.subr.mxu0 0.0
        %1274 = vmatpush1.msra.mxu0 %v1249
        %1275 = vmatprep.subr.mxu0 0.0
        %1276 = vmatpush1.msra.mxu0 %v1250
        %1277 = vmatprep.subr.mxu0 0.0
        %1278 = vmatpush1.msra.mxu0 %v1251
        %1279 = vmatprep.subr.mxu0 0.0
        %1280 = vmatpush1.msra.mxu0 %v1252
        %1281 = vmatprep.subr.mxu0 0.0
        %1282 = vmatpush1.msra.mxu0 %v1253
        %1283 = vmatprep.subr.mxu0 0.0
        %1284 = vmatpush1.msra.mxu0 %v1254
        %1285 = vmatprep.subr.mxu0 0.0
        %1286 = vmatpush1.msra.mxu0 %v1255
        %1287 = vmatprep.subr.mxu0 0.0
        %1288 = vmatpush1.msra.mxu0 %v1256
        %1289 = vmatprep.subr.mxu0 0.0
        %1290 = vmatpush1.msra.mxu0 0.0
        %1291 = vmatprep.subr.mxu0 0.0
        %1292 = vmatpush1.msra.mxu0 0.0
        %1293 = vmatprep.subr.mxu0 0.0
        %1294 = vmatpush1.msra.mxu0 0.0
        %1295 = vmatprep.subr.mxu0 0.0
        %1296 = vmatpush1.msra.mxu0 0.0
        %1297 = vmatprep.subr.mxu0 0.0
        %1298 = vmatpush1.msra.mxu0 0.0
        %1299 = vmatprep.subr.mxu0 0.0
        %1300 = vmatpush1.msra.mxu0 0.0
        %1301 = vmatprep.subr.mxu0 0.0
        %1302 = vmatpush1.msra.mxu0 0.0
        %1303 = vmatprep.subr.mxu0 0.0
        %1304 = vmatpush1.msra.mxu0 0.0
        %1305 = vmatprep.subr.mxu0 0.0
        %1306 = vmatpush1.msra.mxu0 0.0
        %1307 = vmatprep.subr.mxu0 0.0
        %1308 = vmatpush1.msra.mxu0 0.0
        %1309 = vmatprep.subr.mxu0 0.0
        %1310 = vmatpush1.msra.mxu0 0.0
        %1311 = vmatprep.subr.mxu0 0.0
        %1312 = vmatpush1.msra.mxu0 0.0
        %1313 = vmatprep.subr.mxu0 0.0
        %1314 = vmatpush1.msra.mxu0 0.0
        %1315 = vmatprep.subr.mxu0 0.0
        %1316 = vmatpush1.msra.mxu0 0.0
        %1317 = vmatprep.subr.mxu0 0.0
        %1318 = vmatpush1.msra.mxu0 0.0
        %1319 = vmatprep.subr.mxu0 0.0
        %1320 = vmatpush1.msra.mxu0 0.0
        %1321 = vmatprep.mubr.f32.mxu0 0.0
        %1322 = vmatmul.mubr.f32.gmra.mrb[0].mxu0 %v801
        %v1323 = vpop.f32.mrb[0].mxu0
        %v1324 = vadd.f32 0.0, %v1323
        %v1325 = vpop.f32.mrb[0].mxu0
        %1326 = vmatprep.mubr.f32.mxu0 0.0
        %1327 = vmatmul.mubr.f32.gmra.mrb[0].mxu0 %v802
        %v1328 = vpop.f32.mrb[0].mxu0
        %v1329 = vadd.f32 0.0, %v1328
        %v1330 = vpop.f32.mrb[0].mxu0
        %1331 = vdwg.mxu0
        %1332 = vset.pattern.permute.xlu0 3
        %1333 = vperm.xlu0 %1332, %v717
        %v1334 = vpop.permute.xlu0 %1333
        %1336 = vset.pattern.permute.xlu0 3
        %1337 = vperm.xlu0 %1336, %v722
        %v1338 = vpop.permute.xlu0 %1337
        %1340 = vset.pattern.permute.xlu0 3
        %1341 = vperm.xlu0 %1340, %v727
        %v1342 = vpop.permute.xlu0 %1341
        %1344 = vset.pattern.permute.xlu0 3
        %1345 = vperm.xlu0 %1344, %v732
        %v1346 = vpop.permute.xlu0 %1345
        %1348 = vset.pattern.permute.xlu0 3
        %1349 = vperm.xlu0 %1348, %v737
        %v1350 = vpop.permute.xlu0 %1349
        %1352 = vset.pattern.permute.xlu0 3
        %1353 = vperm.xlu0 %1352, %v742
        %v1354 = vpop.permute.xlu0 %1353
        %1356 = vset.pattern.permute.xlu0 3
        %1357 = vperm.xlu0 %1356, %v747
        %v1358 = vpop.permute.xlu0 %1357
        %1360 = vset.pattern.permute.xlu0 3
        %1361 = vperm.xlu0 %1360, %v752
        %v1362 = vpop.permute.xlu0 %1361
        %1364 = vset.pattern.permute.xlu0 3
        %1365 = vperm.xlu0 %1364, %v757
        %v1366 = vpop.permute.xlu0 %1365
        %1368 = vset.pattern.permute.xlu0 3
        %1369 = vperm.xlu0 %1368, %v762
        %v1370 = vpop.permute.xlu0 %1369
        %1372 = vset.pattern.permute.xlu0 3
        %1373 = vperm.xlu0 %1372, %v767
        %v1374 = vpop.permute.xlu0 %1373
        %1376 = vset.pattern.permute.xlu0 3
        %1377 = vperm.xlu0 %1376, %v772
        %v1378 = vpop.permute.xlu0 %1377
        %1380 = vset.pattern.permute.xlu0 3
        %1381 = vperm.xlu0 %1380, %v777
        %v1382 = vpop.permute.xlu0 %1381
        %1384 = vset.pattern.permute.xlu0 3
        %1385 = vperm.xlu0 %1384, %v782
        %v1386 = vpop.permute.xlu0 %1385
        %1388 = vset.pattern.permute.xlu0 3
        %1389 = vperm.xlu0 %1388, %v787
        %v1390 = vpop.permute.xlu0 %1389
        %1392 = vset.pattern.permute.xlu0 3
        %1393 = vperm.xlu0 %1392, %v792
        %v1394 = vpop.permute.xlu0 %1393
        %v1396 = vmul.f32 %v581, %v1334
        %v1397 = vmul.f32 %v582, %v1338
        %v1398 = vmul.f32 %v583, %v1342
        %v1399 = vmul.f32 %v584, %v1346
        %v1400 = vmul.f32 %v585, %v1350
        %v1401 = vmul.f32 %v586, %v1354
        %v1402 = vmul.f32 %v587, %v1358
        %v1403 = vmul.f32 %v588, %v1362
        %v1404 = vmul.f32 %v589, %v1366
        %v1405 = vmul.f32 %v590, %v1370
        %v1406 = vmul.f32 %v591, %v1374
        %v1407 = vmul.f32 %v592, %v1378
        %v1408 = vmul.f32 %v593, %v1382
        %v1409 = vmul.f32 %v594, %v1386
        %v1410 = vmul.f32 %v595, %v1390
        %v1411 = vmul.f32 %v596, %v1394
        %v1412 = vadd.f32 %v581, %v1396
        %v1413 = vadd.f32 %v582, %v1397
        %v1414 = vadd.f32 %v583, %v1398
        %v1415 = vadd.f32 %v584, %v1399
        %v1416 = vadd.f32 %v585, %v1400
        %v1417 = vadd.f32 %v586, %v1401
        %v1418 = vadd.f32 %v587, %v1402
        %v1419 = vadd.f32 %v588, %v1403
        %v1420 = vadd.f32 %v589, %v1404
        %v1421 = vadd.f32 %v590, %v1405
        %v1422 = vadd.f32 %v591, %v1406
        %v1423 = vadd.f32 %v592, %v1407
        %v1424 = vadd.f32 %v593, %v1408
        %v1425 = vadd.f32 %v594, %v1409
        %v1426 = vadd.f32 %v595, %v1410
        %v1427 = vadd.f32 %v596, %v1411
        %1428 = vmatprep.subr.mxu0 0.0
        %1429 = vmatpush1.msra.mxu0 %v1412
        %1430 = vmatprep.subr.mxu0 0.0
        %1431 = vmatpush1.msra.mxu0 %v1413
        %1432 = vmatprep.subr.mxu0 0.0
        %1433 = vmatpush1.msra.mxu0 %v1414
        %1434 = vmatprep.subr.mxu0 0.0
        %1435 = vmatpush1.msra.mxu0 %v1415
        %1436 = vmatprep.subr.mxu0 0.0
        %1437 = vmatpush1.msra.mxu0 %v1416
        %1438 = vmatprep.subr.mxu0 0.0
        %1439 = vmatpush1.msra.mxu0 %v1417
        %1440 = vmatprep.subr.mxu0 0.0
        %1441 = vmatpush1.msra.mxu0 %v1418
        %1442 = vmatprep.subr.mxu0 0.0
        %1443 = vmatpush1.msra.mxu0 %v1419
        %1444 = vmatprep.subr.mxu0 0.0
        %1445 = vmatpush1.msra.mxu0 %v1420
        %1446 = vmatprep.subr.mxu0 0.0
        %1447 = vmatpush1.msra.mxu0 %v1421
        %1448 = vmatprep.subr.mxu0 0.0
        %1449 = vmatpush1.msra.mxu0 %v1422
        %1450 = vmatprep.subr.mxu0 0.0
        %1451 = vmatpush1.msra.mxu0 %v1423
        %1452 = vmatprep.subr.mxu0 0.0
        %1453 = vmatpush1.msra.mxu0 %v1424
        %1454 = vmatprep.subr.mxu0 0.0
        %1455 = vmatpush1.msra.mxu0 %v1425
        %1456 = vmatprep.subr.mxu0 0.0
        %1457 = vmatpush1.msra.mxu0 %v1426
        %1458 = vmatprep.subr.mxu0 0.0
        %1459 = vmatpush1.msra.mxu0 %v1427
        %1460 = vmatprep.subr.mxu0 0.0
        %1461 = vmatpush1.msra.mxu0 0.0
        %1462 = vmatprep.subr.mxu0 0.0
        %1463 = vmatpush1.msra.mxu0 0.0
        %1464 = vmatprep.subr.mxu0 0.0
        %1465 = vmatpush1.msra.mxu0 0.0
        %1466 = vmatprep.subr.mxu0 0.0
        %1467 = vmatpush1.msra.mxu0 0.0
        %1468 = vmatprep.subr.mxu0 0.0
        %1469 = vmatpush1.msra.mxu0 0.0
        %1470 = vmatprep.subr.mxu0 0.0
        %1471 = vmatpush1.msra.mxu0 0.0
        %1472 = vmatprep.subr.mxu0 0.0
        %1473 = vmatpush1.msra.mxu0 0.0
        %1474 = vmatprep.subr.mxu0 0.0
        %1475 = vmatpush1.msra.mxu0 0.0
        %1476 = vmatprep.subr.mxu0 0.0
        %1477 = vmatpush1.msra.mxu0 0.0
        %1478 = vmatprep.subr.mxu0 0.0
        %1479 = vmatpush1.msra.mxu0 0.0
        %1480 = vmatprep.subr.mxu0 0.0
        %1481 = vmatpush1.msra.mxu0 0.0
        %1482 = vmatprep.subr.mxu0 0.0
        %1483 = vmatpush1.msra.mxu0 0.0
        %1484 = vmatprep.subr.mxu0 0.0
        %1485 = vmatpush1.msra.mxu0 0.0
        %1486 = vmatprep.subr.mxu0 0.0
        %1487 = vmatpush1.msra.mxu0 0.0
        %1488 = vmatprep.subr.mxu0 0.0
        %1489 = vmatpush1.msra.mxu0 0.0
        %1490 = vmatprep.subr.mxu0 0.0
        %1491 = vmatpush1.msra.mxu0 0.0
        %1492 = vmatprep.mubr.f32.mxu0 0.0
        %1493 = vmatmul.mubr.f32.gmra.mrb[0].mxu0 %v801
        %v1494 = vpop.f32.mrb[0].mxu0
        %v1495 = vadd.f32 0.0, %v1494
        %v1496 = vpop.f32.mrb[0].mxu0
        %1497 = vmatprep.mubr.f32.mxu0 0.0
        %1498 = vmatmul.mubr.f32.gmra.mrb[0].mxu0 %v802
        %v1499 = vpop.f32.mrb[0].mxu0
        %v1500 = vadd.f32 0.0, %v1499
        %v1501 = vpop.f32.mrb[0].mxu0
        %1502 = vdwg.mxu0
        %v1503 = vld [vmem:[#allocation2] sm:$0xff]
        %v1504 = vld [vmem:[#allocation2 + $0x8] sm:$0xff]
        %1507 = vrot.lane.b32.xlu0 %v1153, 32
        %v1508 = vpop.permute.xlu0 %1507
        %1509 = vrot.lane.b32.xlu0 %v1158, 32
        %v1510 = vpop.permute.xlu0 %1509
        %1515 = vrot.lane.b32.xlu0 %v1324, 64
        %v1516 = vpop.permute.xlu0 %1515
        %1517 = vrot.lane.b32.xlu0 %v1329, 64
        %v1518 = vpop.permute.xlu0 %1517
        %1523 = vrot.lane.b32.xlu0 %v1495, 96
        %v1524 = vpop.permute.xlu0 %1523
        %1525 = vrot.lane.b32.xlu0 %v1500, 96
        %v1526 = vpop.permute.xlu0 %1525
        %v1529 = vsel %vm601, %v982, %v1508
        %v1530 = vsel %vm601, %v987, %v1510
        %vm1531 = vcmask 523264
        %v1532 = vsel %vm1531, %v1529, %v1516
        %v1533 = vsel %vm1531, %v1530, %v1518
        %vm1534 = vcmask 785408
        %v1535 = vsel %vm1534, %v1532, %v1524
        %v1536 = vsel %vm1534, %v1533, %v1526
        %v1537 = vadd.f32 %v1503, %v1535
        %v1538 = vadd.f32 %v1504, %v1536
        %1539 = vst [vmem:[#allocation2] sm:$0xff] %v1537
        %1540 = vst [vmem:[#allocation2 + $0x8] sm:$0xff] %v1538
        %v1541 = vlaneseq
        %v1542 = vand.u32 %v1541, 127
        %v1543 = vstv %s580
        %vm1544 = vcmp.eq.s32.totalorder %v1542, %v1543
        %v1545 = vsel %vm1544, 1, 0
        %vm1546 = vcmp.eq.s32.totalorder %v1545, 1
        %v1547 = vsel %vm1546, %v717, 0.0
        %v1548 = vsel %vm1546, %v722, 0.0
        %v1549 = vsel %vm1546, %v727, 0.0
        %v1550 = vsel %vm1546, %v732, 0.0
        %v1551 = vsel %vm1546, %v737, 0.0
        %v1552 = vsel %vm1546, %v742, 0.0
        %v1553 = vsel %vm1546, %v747, 0.0
        %v1554 = vsel %vm1546, %v752, 0.0
        %v1555 = vsel %vm1546, %v757, 0.0
        %v1556 = vsel %vm1546, %v762, 0.0
        %v1557 = vsel %vm1546, %v767, 0.0
        %v1558 = vsel %vm1546, %v772, 0.0
        %v1559 = vsel %vm1546, %v777, 0.0
        %v1560 = vsel %vm1546, %v782, 0.0
        %v1561 = vsel %vm1546, %v787, 0.0
        %v1562 = vsel %vm1546, %v792, 0.0
        %vm1563 = vcmask 31744
        %v1564 = vsel %vm1563, %v1547, 0.0
        %1565 = vadd.xlane.f32.xlu0 %v1564
        %v1566 = vpop.xlane.xlu0 %1565
        %v1567 = vsel %vm1563, %v1548, 0.0
        %1568 = vadd.xlane.f32.xlu0 %v1567
        %v1569 = vpop.xlane.xlu0 %1568
        %v1570 = vsel %vm1563, %v1549, 0.0
        %1571 = vadd.xlane.f32.xlu0 %v1570
        %v1572 = vpop.xlane.xlu0 %1571
        %v1573 = vsel %vm1563, %v1550, 0.0
        %1574 = vadd.xlane.f32.xlu0 %v1573
        %v1575 = vpop.xlane.xlu0 %1574
        %v1576 = vsel %vm1563, %v1551, 0.0
        %1577 = vadd.xlane.f32.xlu0 %v1576
        %v1578 = vpop.xlane.xlu0 %1577
        %v1579 = vsel %vm1563, %v1552, 0.0
        %1580 = vadd.xlane.f32.xlu0 %v1579
        %v1581 = vpop.xlane.xlu0 %1580
        %v1582 = vsel %vm1563, %v1553, 0.0
        %1583 = vadd.xlane.f32.xlu0 %v1582
        %v1584 = vpop.xlane.xlu0 %1583
        %v1585 = vsel %vm1563, %v1554, 0.0
        %1586 = vadd.xlane.f32.xlu0 %v1585
        %v1587 = vpop.xlane.xlu0 %1586
        %v1588 = vsel %vm1563, %v1555, 0.0
        %1589 = vadd.xlane.f32.xlu0 %v1588
        %v1590 = vpop.xlane.xlu0 %1589
        %v1591 = vsel %vm1563, %v1556, 0.0
        %1592 = vadd.xlane.f32.xlu0 %v1591
        %v1593 = vpop.xlane.xlu0 %1592
        %v1594 = vsel %vm1563, %v1557, 0.0
        %1595 = vadd.xlane.f32.xlu0 %v1594
        %v1596 = vpop.xlane.xlu0 %1595
        %v1597 = vsel %vm1563, %v1558, 0.0
        %1598 = vadd.xlane.f32.xlu0 %v1597
        %v1599 = vpop.xlane.xlu0 %1598
        %v1600 = vsel %vm1563, %v1559, 0.0
        %1601 = vadd.xlane.f32.xlu0 %v1600
        %v1602 = vpop.xlane.xlu0 %1601
        %v1603 = vsel %vm1563, %v1560, 0.0
        %1604 = vadd.xlane.f32.xlu0 %v1603
        %v1605 = vpop.xlane.xlu0 %1604
        %v1606 = vsel %vm1563, %v1561, 0.0
        %1607 = vadd.xlane.f32.xlu0 %v1606
        %v1608 = vpop.xlane.xlu0 %1607
        %v1609 = vsel %vm1563, %v1562, 0.0
        %1610 = vadd.xlane.f32.xlu0 %v1609
        %v1611 = vpop.xlane.xlu0 %1610
        %v1612 = vmul.f32 %v581, %v1566
        %v1613 = vmul.f32 %v582, %v1569
        %v1614 = vmul.f32 %v583, %v1572
        %v1615 = vmul.f32 %v584, %v1575
        %v1616 = vmul.f32 %v585, %v1578
        %v1617 = vmul.f32 %v586, %v1581
        %v1618 = vmul.f32 %v587, %v1584
        %v1619 = vmul.f32 %v588, %v1587
        %v1620 = vmul.f32 %v589, %v1590
        %v1621 = vmul.f32 %v590, %v1593
        %v1622 = vmul.f32 %v591, %v1596
        %v1623 = vmul.f32 %v592, %v1599
        %v1624 = vmul.f32 %v593, %v1602
        %v1625 = vmul.f32 %v594, %v1605
        %v1626 = vmul.f32 %v595, %v1608
        %v1627 = vmul.f32 %v596, %v1611
        %v1628 = vadd.f32 %v581, %v1612
        %v1629 = vadd.f32 %v582, %v1613
        %v1630 = vadd.f32 %v583, %v1614
        %v1631 = vadd.f32 %v584, %v1615
        %v1632 = vadd.f32 %v585, %v1616
        %v1633 = vadd.f32 %v586, %v1617
        %v1634 = vadd.f32 %v587, %v1618
        %v1635 = vadd.f32 %v588, %v1619
        %v1636 = vadd.f32 %v589, %v1620
        %v1637 = vadd.f32 %v590, %v1621
        %v1638 = vadd.f32 %v591, %v1622
        %v1639 = vadd.f32 %v592, %v1623
        %v1640 = vadd.f32 %v593, %v1624
        %v1641 = vadd.f32 %v594, %v1625
        %v1642 = vadd.f32 %v595, %v1626
        %v1643 = vadd.f32 %v596, %v1627
        %1644 = vst.msk [vmem:[%s567] sm:$0xff] %vm601, %v1628
        %1645 = vst.msk [vmem:[%s567 + $0x8] sm:$0xff] %vm601, %v1629
        %1646 = vst.msk [vmem:[%s567 + $0x10] sm:$0xff] %vm601, %v1630
        %1647 = vst.msk [vmem:[%s567 + $0x18] sm:$0xff] %vm601, %v1631
        %1648 = vst.msk [vmem:[%s567 + $0x20] sm:$0xff] %vm601, %v1632
        %1649 = vst.msk [vmem:[%s567 + $0x28] sm:$0xff] %vm601, %v1633
        %1650 = vst.msk [vmem:[%s567 + $0x30] sm:$0xff] %vm601, %v1634
        %1651 = vst.msk [vmem:[%s567 + $0x38] sm:$0xff] %vm601, %v1635
        %1652 = vst.msk [vmem:[%s567 + $0x40] sm:$0xff] %vm601, %v1636
        %1653 = vst.msk [vmem:[%s567 + $0x48] sm:$0xff] %vm601, %v1637
        %1654 = vst.msk [vmem:[%s567 + $0x50] sm:$0xff] %vm601, %v1638
        %1655 = vst.msk [vmem:[%s567 + $0x58] sm:$0xff] %vm601, %v1639
        %1656 = vst.msk [vmem:[%s567 + $0x60] sm:$0xff] %vm601, %v1640
        %1657 = vst.msk [vmem:[%s567 + $0x68] sm:$0xff] %vm601, %v1641
        %1658 = vst.msk [vmem:[%s567 + $0x70] sm:$0xff] %vm601, %v1642
        %1659 = vst.msk [vmem:[%s567 + $0x78] sm:$0xff] %vm601, %v1643
        %v1660 = vld [vmem:[%s3] sm:$0xff]
        %v1661 = vld [vmem:[%s3 + $0x8] sm:$0xff]
        %v1662 = vld [vmem:[%s3 + $0x10] sm:$0xff]
        %v1663 = vld [vmem:[%s3 + $0x18] sm:$0xff]
        %v1664 = vld [vmem:[%s4] sm:$0x1]
        %v1666 = vlaneseq
        %v1667 = vshrl.u32 %v1666, 7
        %v1668 = vsub.s32 0, %v1667
        %v1669 = vrot.slane %v1664, %v1668
        %v1672 = vsel %vm601, %v1628, 0
        %v1675 = vsel %vm601, %v1629, 0
        %v1678 = vsel %vm601, %v1630, 0
        %v1681 = vsel %vm601, %v1631, 0
        %v1684 = vsel %vm601, %v1632, 0
        %v1687 = vsel %vm601, %v1633, 0
        %v1690 = vsel %vm601, %v1634, 0
        %v1693 = vsel %vm601, %v1635, 0
        %v1696 = vsel %vm601, %v1636, 0
        %v1699 = vsel %vm601, %v1637, 0
        %v1702 = vsel %vm601, %v1638, 0
        %v1705 = vsel %vm601, %v1639, 0
        %v1708 = vsel %vm601, %v1640, 0
        %v1711 = vsel %vm601, %v1641, 0
        %v1714 = vsel %vm601, %v1642, 0
        %v1717 = vsel %vm601, %v1643, 0
        %1719 = vmatprep.subr.mxu0 0.0
        %1720 = vmatpush1.msra.mxu0 %v1660
        %1721 = vmatprep.subr.mxu0 0.0
        %1722 = vmatpush1.msra.mxu0 %v1661
        %1723 = vmatprep.subr.mxu0 0.0
        %1724 = vmatpush1.msra.mxu0 %v1662
        %1725 = vmatprep.subr.mxu0 0.0
        %1726 = vmatpush1.msra.mxu0 %v1663
        %1727 = vmatprep.subr.mxu0 0.0
        %1728 = vmatpush1.msra.mxu0 0.0
        %1729 = vmatprep.subr.mxu0 0.0
        %1730 = vmatpush1.msra.mxu0 0.0
        %1731 = vmatprep.subr.mxu0 0.0
        %1732 = vmatpush1.msra.mxu0 0.0
        %1733 = vmatprep.subr.mxu0 0.0
        %1734 = vmatpush1.msra.mxu0 0.0
        %1735 = vmatprep.subr.mxu0 0.0
        %1736 = vmatpush1.msra.mxu0 0.0
        %1737 = vmatprep.subr.mxu0 0.0
        %1738 = vmatpush1.msra.mxu0 0.0
        %1739 = vmatprep.subr.mxu0 0.0
        %1740 = vmatpush1.msra.mxu0 0.0
        %1741 = vmatprep.subr.mxu0 0.0
        %1742 = vmatpush1.msra.mxu0 0.0
        %1743 = vmatprep.subr.mxu0 0.0
        %1744 = vmatpush1.msra.mxu0 0.0
        %1745 = vmatprep.subr.mxu0 0.0
        %1746 = vmatpush1.msra.mxu0 0.0
        %1747 = vmatprep.subr.mxu0 0.0
        %1748 = vmatpush1.msra.mxu0 0.0
        %1749 = vmatprep.subr.mxu0 0.0
        %1750 = vmatpush1.msra.mxu0 0.0
        %1751 = vmatprep.subr.mxu0 0.0
        %1752 = vmatpush1.msra.mxu0 0.0
        %1753 = vmatprep.subr.mxu0 0.0
        %1754 = vmatpush1.msra.mxu0 0.0
        %1755 = vmatprep.subr.mxu0 0.0
        %1756 = vmatpush1.msra.mxu0 0.0
        %1757 = vmatprep.subr.mxu0 0.0
        %1758 = vmatpush1.msra.mxu0 0.0
        %1759 = vmatprep.subr.mxu0 0.0
        %1760 = vmatpush1.msra.mxu0 0.0
        %1761 = vmatprep.subr.mxu0 0.0
        %1762 = vmatpush1.msra.mxu0 0.0
        %1763 = vmatprep.subr.mxu0 0.0
        %1764 = vmatpush1.msra.mxu0 0.0
        %1765 = vmatprep.subr.mxu0 0.0
        %1766 = vmatpush1.msra.mxu0 0.0
        %1767 = vmatprep.subr.mxu0 0.0
        %1768 = vmatpush1.msra.mxu0 0.0
        %1769 = vmatprep.subr.mxu0 0.0
        %1770 = vmatpush1.msra.mxu0 0.0
        %1771 = vmatprep.subr.mxu0 0.0
        %1772 = vmatpush1.msra.mxu0 0.0
        %1773 = vmatprep.subr.mxu0 0.0
        %1774 = vmatpush1.msra.mxu0 0.0
        %1775 = vmatprep.subr.mxu0 0.0
        %1776 = vmatpush1.msra.mxu0 0.0
        %1777 = vmatprep.subr.mxu0 0.0
        %1778 = vmatpush1.msra.mxu0 0.0
        %1779 = vmatprep.subr.mxu0 0.0
        %1780 = vmatpush1.msra.mxu0 0.0
        %1781 = vmatprep.subr.mxu0 0.0
        %1782 = vmatpush1.msra.mxu0 0.0
        %1783 = vmatprep.mubr.f32.mxu0 0.0
        %1784 = vmatmul.mubr.f32.gmra.mrb[0].mxu0 %v1672
        %v1785 = vpop.f32.mrb[0].mxu0
        %v1786 = vadd.f32 %v1669, %v1785
        %v1787 = vpop.f32.mrb[0].mxu0
        %1788 = vmatprep.mubr.f32.mxu0 0.0
        %1789 = vmatmul.mubr.f32.gmra.mrb[0].mxu0 %v1675
        %v1790 = vpop.f32.mrb[0].mxu0
        %v1791 = vadd.f32 %v1669, %v1790
        %v1792 = vpop.f32.mrb[0].mxu0
        %1793 = vmatprep.mubr.f32.mxu0 0.0
        %1794 = vmatmul.mubr.f32.gmra.mrb[0].mxu0 %v1678
        %v1795 = vpop.f32.mrb[0].mxu0
        %v1796 = vadd.f32 %v1669, %v1795
        %v1797 = vpop.f32.mrb[0].mxu0
        %1798 = vmatprep.mubr.f32.mxu0 0.0
        %1799 = vmatmul.mubr.f32.gmra.mrb[0].mxu0 %v1681
        %v1800 = vpop.f32.mrb[0].mxu0
        %v1801 = vadd.f32 %v1669, %v1800
        %v1802 = vpop.f32.mrb[0].mxu0
        %1803 = vmatprep.mubr.f32.mxu0 0.0
        %1804 = vmatmul.mubr.f32.gmra.mrb[0].mxu0 %v1684
        %v1805 = vpop.f32.mrb[0].mxu0
        %v1806 = vadd.f32 %v1669, %v1805
        %v1807 = vpop.f32.mrb[0].mxu0
        %1808 = vmatprep.mubr.f32.mxu0 0.0
        %1809 = vmatmul.mubr.f32.gmra.mrb[0].mxu0 %v1687
        %v1810 = vpop.f32.mrb[0].mxu0
        %v1811 = vadd.f32 %v1669, %v1810
        %v1812 = vpop.f32.mrb[0].mxu0
        %1813 = vmatprep.mubr.f32.mxu0 0.0
        %1814 = vmatmul.mubr.f32.gmra.mrb[0].mxu0 %v1690
        %v1815 = vpop.f32.mrb[0].mxu0
        %v1816 = vadd.f32 %v1669, %v1815
        %v1817 = vpop.f32.mrb[0].mxu0
        %1818 = vmatprep.mubr.f32.mxu0 0.0
        %1819 = vmatmul.mubr.f32.gmra.mrb[0].mxu0 %v1693
        %v1820 = vpop.f32.mrb[0].mxu0
        %v1821 = vadd.f32 %v1669, %v1820
        %v1822 = vpop.f32.mrb[0].mxu0
        %1823 = vmatprep.mubr.f32.mxu0 0.0
        %1824 = vmatmul.mubr.f32.gmra.mrb[0].mxu0 %v1696
        %v1825 = vpop.f32.mrb[0].mxu0
        %v1826 = vadd.f32 %v1669, %v1825
        %v1827 = vpop.f32.mrb[0].mxu0
        %1828 = vmatprep.mubr.f32.mxu0 0.0
        %1829 = vmatmul.mubr.f32.gmra.mrb[0].mxu0 %v1699
        %v1830 = vpop.f32.mrb[0].mxu0
        %v1831 = vadd.f32 %v1669, %v1830
        %v1832 = vpop.f32.mrb[0].mxu0
        %1833 = vmatprep.mubr.f32.mxu0 0.0
        %1834 = vmatmul.mubr.f32.gmra.mrb[0].mxu0 %v1702
        %v1835 = vpop.f32.mrb[0].mxu0
        %v1836 = vadd.f32 %v1669, %v1835
        %v1837 = vpop.f32.mrb[0].mxu0
        %1838 = vmatprep.mubr.f32.mxu0 0.0
        %1839 = vmatmul.mubr.f32.gmra.mrb[0].mxu0 %v1705
        %v1840 = vpop.f32.mrb[0].mxu0
        %v1841 = vadd.f32 %v1669, %v1840
        %v1842 = vpop.f32.mrb[0].mxu0
        %1843 = vmatprep.mubr.f32.mxu0 0.0
        %1844 = vmatmul.mubr.f32.gmra.mrb[0].mxu0 %v1708
        %v1845 = vpop.f32.mrb[0].mxu0
        %v1846 = vadd.f32 %v1669, %v1845
        %v1847 = vpop.f32.mrb[0].mxu0
        %1848 = vmatprep.mubr.f32.mxu0 0.0
        %1849 = vmatmul.mubr.f32.gmra.mrb[0].mxu0 %v1711
        %v1850 = vpop.f32.mrb[0].mxu0
        %v1851 = vadd.f32 %v1669, %v1850
        %v1852 = vpop.f32.mrb[0].mxu0
        %1853 = vmatprep.mubr.f32.mxu0 0.0
        %1854 = vmatmul.mubr.f32.gmra.mrb[0].mxu0 %v1714
        %v1855 = vpop.f32.mrb[0].mxu0
        %v1856 = vadd.f32 %v1669, %v1855
        %v1857 = vpop.f32.mrb[0].mxu0
        %1858 = vmatprep.mubr.f32.mxu0 0.0
        %1859 = vmatmul.mubr.f32.gmra.mrb[0].mxu0 %v1717
        %v1860 = vpop.f32.mrb[0].mxu0
        %v1861 = vadd.f32 %v1669, %v1860
        %v1862 = vpop.f32.mrb[0].mxu0
        %1863 = vdwg.mxu0
        %v1864 = vmax.f32 %v1786, 0.0
        %v1865 = vmax.f32 %v1791, 0.0
        %v1866 = vmax.f32 %v1796, 0.0
        %v1867 = vmax.f32 %v1801, 0.0
        %v1868 = vmax.f32 %v1806, 0.0
        %v1869 = vmax.f32 %v1811, 0.0
        %v1870 = vmax.f32 %v1816, 0.0
        %v1871 = vmax.f32 %v1821, 0.0
        %v1872 = vmax.f32 %v1826, 0.0
        %v1873 = vmax.f32 %v1831, 0.0
        %v1874 = vmax.f32 %v1836, 0.0
        %v1875 = vmax.f32 %v1841, 0.0
        %v1876 = vmax.f32 %v1846, 0.0
        %v1877 = vmax.f32 %v1851, 0.0
        %v1878 = vmax.f32 %v1856, 0.0
        %v1879 = vmax.f32 %v1861, 0.0
        %v1880 = vld [vmem:[%s5] sm:$0xff]
        %v1881 = vld [vmem:[%s5 + $0x8] sm:$0xff]
        %v1882 = vld [vmem:[%s6] sm:$0x1]
        %v1884 = vlaneseq
        %v1885 = vshrl.u32 %v1884, 7
        %v1886 = vsub.s32 0, %v1885
        %v1887 = vrot.slane %v1882, %v1886
        %vm1889 = vcmask 130048
        %v1891 = vsel %vm1889, %v1864, 0
        %v1894 = vsel %vm1889, %v1865, 0
        %v1897 = vsel %vm1889, %v1866, 0
        %v1900 = vsel %vm1889, %v1867, 0
        %v1903 = vsel %vm1889, %v1868, 0
        %v1906 = vsel %vm1889, %v1869, 0
        %v1909 = vsel %vm1889, %v1870, 0
        %v1912 = vsel %vm1889, %v1871, 0
        %v1915 = vsel %vm1889, %v1872, 0
        %v1918 = vsel %vm1889, %v1873, 0
        %v1921 = vsel %vm1889, %v1874, 0
        %v1924 = vsel %vm1889, %v1875, 0
        %v1927 = vsel %vm1889, %v1876, 0
        %v1930 = vsel %vm1889, %v1877, 0
        %v1933 = vsel %vm1889, %v1878, 0
        %v1936 = vsel %vm1889, %v1879, 0
        %1938 = vmatprep.subr.mxu0 0.0
        %1939 = vmatpush1.msra.mxu0 %v1880
        %1940 = vmatprep.subr.mxu0 0.0
        %1941 = vmatpush1.msra.mxu0 %v1881
        %1942 = vmatprep.subr.mxu0 0.0
        %1943 = vmatpush1.msra.mxu0 0.0
        %1944 = vmatprep.subr.mxu0 0.0
        %1945 = vmatpush1.msra.mxu0 0.0
        %1946 = vmatprep.subr.mxu0 0.0
        %1947 = vmatpush1.msra.mxu0 0.0
        %1948 = vmatprep.subr.mxu0 0.0
        %1949 = vmatpush1.msra.mxu0 0.0
        %1950 = vmatprep.subr.mxu0 0.0
        %1951 = vmatpush1.msra.mxu0 0.0
        %1952 = vmatprep.subr.mxu0 0.0
        %1953 = vmatpush1.msra.mxu0 0.0
        %1954 = vmatprep.subr.mxu0 0.0
        %1955 = vmatpush1.msra.mxu0 0.0
        %1956 = vmatprep.subr.mxu0 0.0
        %1957 = vmatpush1.msra.mxu0 0.0
        %1958 = vmatprep.subr.mxu0 0.0
        %1959 = vmatpush1.msra.mxu0 0.0
        %1960 = vmatprep.subr.mxu0 0.0
        %1961 = vmatpush1.msra.mxu0 0.0
        %1962 = vmatprep.subr.mxu0 0.0
        %1963 = vmatpush1.msra.mxu0 0.0
        %1964 = vmatprep.subr.mxu0 0.0
        %1965 = vmatpush1.msra.mxu0 0.0
        %1966 = vmatprep.subr.mxu0 0.0
        %1967 = vmatpush1.msra.mxu0 0.0
        %1968 = vmatprep.subr.mxu0 0.0
        %1969 = vmatpush1.msra.mxu0 0.0
        %1970 = vmatprep.subr.mxu0 0.0
        %1971 = vmatpush1.msra.mxu0 0.0
        %1972 = vmatprep.subr.mxu0 0.0
        %1973 = vmatpush1.msra.mxu0 0.0
        %1974 = vmatprep.subr.mxu0 0.0
        %1975 = vmatpush1.msra.mxu0 0.0
        %1976 = vmatprep.subr.mxu0 0.0
        %1977 = vmatpush1.msra.mxu0 0.0
        %1978 = vmatprep.subr.mxu0 0.0
        %1979 = vmatpush1.msra.mxu0 0.0
        %1980 = vmatprep.subr.mxu0 0.0
        %1981 = vmatpush1.msra.mxu0 0.0
        %1982 = vmatprep.subr.mxu0 0.0
        %1983 = vmatpush1.msra.mxu0 0.0
        %1984 = vmatprep.subr.mxu0 0.0
        %1985 = vmatpush1.msra.mxu0 0.0
        %1986 = vmatprep.subr.mxu0 0.0
        %1987 = vmatpush1.msra.mxu0 0.0
        %1988 = vmatprep.subr.mxu0 0.0
        %1989 = vmatpush1.msra.mxu0 0.0
        %1990 = vmatprep.subr.mxu0 0.0
        %1991 = vmatpush1.msra.mxu0 0.0
        %1992 = vmatprep.subr.mxu0 0.0
        %1993 = vmatpush1.msra.mxu0 0.0
        %1994 = vmatprep.subr.mxu0 0.0
        %1995 = vmatpush1.msra.mxu0 0.0
        %1996 = vmatprep.subr.mxu0 0.0
        %1997 = vmatpush1.msra.mxu0 0.0
        %1998 = vmatprep.subr.mxu0 0.0
        %1999 = vmatpush1.msra.mxu0 0.0
        %2000 = vmatprep.subr.mxu0 0.0
        %2001 = vmatpush1.msra.mxu0 0.0
        %2002 = vmatprep.mubr.f32.mxu0 0.0
        %2003 = vmatmul.mubr.f32.gmra.mrb[0].mxu0 %v1891
        %v2004 = vpop.f32.mrb[0].mxu0
        %v2005 = vadd.f32 %v1887, %v2004
        %v2006 = vpop.f32.mrb[0].mxu0
        %2007 = vmatprep.mubr.f32.mxu0 0.0
        %2008 = vmatmul.mubr.f32.gmra.mrb[0].mxu0 %v1894
        %v2009 = vpop.f32.mrb[0].mxu0
        %v2010 = vadd.f32 %v1887, %v2009
        %v2011 = vpop.f32.mrb[0].mxu0
        %2012 = vmatprep.mubr.f32.mxu0 0.0
        %2013 = vmatmul.mubr.f32.gmra.mrb[0].mxu0 %v1897
        %v2014 = vpop.f32.mrb[0].mxu0
        %v2015 = vadd.f32 %v1887, %v2014
        %v2016 = vpop.f32.mrb[0].mxu0
        %2017 = vmatprep.mubr.f32.mxu0 0.0
        %2018 = vmatmul.mubr.f32.gmra.mrb[0].mxu0 %v1900
        %v2019 = vpop.f32.mrb[0].mxu0
        %v2020 = vadd.f32 %v1887, %v2019
        %v2021 = vpop.f32.mrb[0].mxu0
        %2022 = vmatprep.mubr.f32.mxu0 0.0
        %2023 = vmatmul.mubr.f32.gmra.mrb[0].mxu0 %v1903
        %v2024 = vpop.f32.mrb[0].mxu0
        %v2025 = vadd.f32 %v1887, %v2024
        %v2026 = vpop.f32.mrb[0].mxu0
        %2027 = vmatprep.mubr.f32.mxu0 0.0
        %2028 = vmatmul.mubr.f32.gmra.mrb[0].mxu0 %v1906
        %v2029 = vpop.f32.mrb[0].mxu0
        %v2030 = vadd.f32 %v1887, %v2029
        %v2031 = vpop.f32.mrb[0].mxu0
        %2032 = vmatprep.mubr.f32.mxu0 0.0
        %2033 = vmatmul.mubr.f32.gmra.mrb[0].mxu0 %v1909
        %v2034 = vpop.f32.mrb[0].mxu0
        %v2035 = vadd.f32 %v1887, %v2034
        %v2036 = vpop.f32.mrb[0].mxu0
        %2037 = vmatprep.mubr.f32.mxu0 0.0
        %2038 = vmatmul.mubr.f32.gmra.mrb[0].mxu0 %v1912
        %v2039 = vpop.f32.mrb[0].mxu0
        %v2040 = vadd.f32 %v1887, %v2039
        %v2041 = vpop.f32.mrb[0].mxu0
        %2042 = vmatprep.mubr.f32.mxu0 0.0
        %2043 = vmatmul.mubr.f32.gmra.mrb[0].mxu0 %v1915
        %v2044 = vpop.f32.mrb[0].mxu0
        %v2045 = vadd.f32 %v1887, %v2044
        %v2046 = vpop.f32.mrb[0].mxu0
        %2047 = vmatprep.mubr.f32.mxu0 0.0
        %2048 = vmatmul.mubr.f32.gmra.mrb[0].mxu0 %v1918
        %v2049 = vpop.f32.mrb[0].mxu0
        %v2050 = vadd.f32 %v1887, %v2049
        %v2051 = vpop.f32.mrb[0].mxu0
        %2052 = vmatprep.mubr.f32.mxu0 0.0
        %2053 = vmatmul.mubr.f32.gmra.mrb[0].mxu0 %v1921
        %v2054 = vpop.f32.mrb[0].mxu0
        %v2055 = vadd.f32 %v1887, %v2054
        %v2056 = vpop.f32.mrb[0].mxu0
        %2057 = vmatprep.mubr.f32.mxu0 0.0
        %2058 = vmatmul.mubr.f32.gmra.mrb[0].mxu0 %v1924
        %v2059 = vpop.f32.mrb[0].mxu0
        %v2060 = vadd.f32 %v1887, %v2059
        %v2061 = vpop.f32.mrb[0].mxu0
        %2062 = vmatprep.mubr.f32.mxu0 0.0
        %2063 = vmatmul.mubr.f32.gmra.mrb[0].mxu0 %v1927
        %v2064 = vpop.f32.mrb[0].mxu0
        %v2065 = vadd.f32 %v1887, %v2064
        %v2066 = vpop.f32.mrb[0].mxu0
        %2067 = vmatprep.mubr.f32.mxu0 0.0
        %2068 = vmatmul.mubr.f32.gmra.mrb[0].mxu0 %v1930
        %v2069 = vpop.f32.mrb[0].mxu0
        %v2070 = vadd.f32 %v1887, %v2069
        %v2071 = vpop.f32.mrb[0].mxu0
        %2072 = vmatprep.mubr.f32.mxu0 0.0
        %2073 = vmatmul.mubr.f32.gmra.mrb[0].mxu0 %v1933
        %v2074 = vpop.f32.mrb[0].mxu0
        %v2075 = vadd.f32 %v1887, %v2074
        %v2076 = vpop.f32.mrb[0].mxu0
        %2077 = vmatprep.mubr.f32.mxu0 0.0
        %2078 = vmatmul.mubr.f32.gmra.mrb[0].mxu0 %v1936
        %v2079 = vpop.f32.mrb[0].mxu0
        %v2080 = vadd.f32 %v1887, %v2079
        %v2081 = vpop.f32.mrb[0].mxu0
        %2082 = vdwg.mxu0
        %2083 = vst.msk [vmem:[%s577] sm:$0xff] %vm601, %v2005
        %2084 = vst.msk [vmem:[%s577 + $0x8] sm:$0xff] %vm601, %v2010
        %2085 = vst.msk [vmem:[%s577 + $0x10] sm:$0xff] %vm601, %v2015
        %2086 = vst.msk [vmem:[%s577 + $0x18] sm:$0xff] %vm601, %v2020
        %2087 = vst.msk [vmem:[%s577 + $0x20] sm:$0xff] %vm601, %v2025
        %2088 = vst.msk [vmem:[%s577 + $0x28] sm:$0xff] %vm601, %v2030
        %2089 = vst.msk [vmem:[%s577 + $0x30] sm:$0xff] %vm601, %v2035
        %2090 = vst.msk [vmem:[%s577 + $0x38] sm:$0xff] %vm601, %v2040
        %2091 = vst.msk [vmem:[%s577 + $0x40] sm:$0xff] %vm601, %v2045
        %2092 = vst.msk [vmem:[%s577 + $0x48] sm:$0xff] %vm601, %v2050
        %2093 = vst.msk [vmem:[%s577 + $0x50] sm:$0xff] %vm601, %v2055
        %2094 = vst.msk [vmem:[%s577 + $0x58] sm:$0xff] %vm601, %v2060
        %2095 = vst.msk [vmem:[%s577 + $0x60] sm:$0xff] %vm601, %v2065
        %2096 = vst.msk [vmem:[%s577 + $0x68] sm:$0xff] %vm601, %v2070
        %2097 = vst.msk [vmem:[%s577 + $0x70] sm:$0xff] %vm601, %v2075
        %2098 = vst.msk [vmem:[%s577 + $0x78] sm:$0xff] %vm601, %v2080
        %p2099 = scmp.eq.s32.totalorder %s40, 1
        // Predicated region
        $region107: #{tpu_custom_call.1} parent=97 // pred_check
          %p2100 = pneg %p2099
        $region108: #{tpu_custom_call.1} parent=97 // pred_check_branch
          %2102 = sbr.rel (%p2100) target = $region110
        $region109: #{tpu_custom_call.1} parent=97 // pred_region
          %v2103 = vld [vmem:[#allocation2] sm:$0xff]
          %v2104 = vld [vmem:[#allocation2 + $0x8] sm:$0xff]
          %v2105 = vld [vmem:[%s8] sm:$0xff]
          %v2106 = vld [vmem:[%s8 + $0x8] sm:$0xff]
          %2108 = vset.pattern.permute.xlu0 0
          %2109 = vperm.xlu0 %2108, %v2105
          %v2110 = vpop.permute.xlu0 %2109
          %2113 = vset.pattern.permute.xlu0 0
          %2114 = vperm.xlu0 %2113, %v2106
          %v2115 = vpop.permute.xlu0 %2114
          %v2117 = vadd.f32 %v2103, %v2110
          %v2118 = vadd.f32 %v2104, %v2115
          %v2119 = vmax.f32 %v2117, 0.0
          %v2120 = vmax.f32 %v2118, 0.0
          %v2121 = vld [vmem:[%s9] sm:$0xff]
          %s2122 = smul.u32 %s580, 32
          %v2123 = vstv %s2122
          %vm2124 = vcmp.ge.s32.totalorder %v1542, %v2123
          %s2125 = smul.u32 %s579, 32
          %v2126 = vstv %s2125
          %vm2127 = vcmp.lt.s32.totalorder %v1542, %v2126
          %vm2128 = vmand %vm2124, %vm2127
          %v2129 = vld [vmem:[%s10] sm:$0xff]
          %v2130 = vld [vmem:[%s11] sm:$0xff]
          %v2131 = vsel %vm2128, %v2129, %v2130
          %v2133 = vsel %vm1889, %v2121, 0
          %2135 = vmatprep.subr.mxu0 0.0
          %2136 = vmatpush1.msra.mxu0 %v2119
          %2137 = vmatprep.subr.mxu0 0.0
          %2138 = vmatpush1.msra.mxu0 %v2120
          %2139 = vmatprep.subr.mxu0 0.0
          %2140 = vmatpush1.msra.mxu0 0.0
          %2141 = vmatprep.subr.mxu0 0.0
          %2142 = vmatpush1.msra.mxu0 0.0
          %2143 = vmatprep.subr.mxu0 0.0
          %2144 = vmatpush1.msra.mxu0 0.0
          %2145 = vmatprep.subr.mxu0 0.0
          %2146 = vmatpush1.msra.mxu0 0.0
          %2147 = vmatprep.subr.mxu0 0.0
          %2148 = vmatpush1.msra.mxu0 0.0
          %2149 = vmatprep.subr.mxu0 0.0
          %2150 = vmatpush1.msra.mxu0 0.0
          %2151 = vmatprep.subr.mxu0 0.0
          %2152 = vmatpush1.msra.mxu0 0.0
          %2153 = vmatprep.subr.mxu0 0.0
          %2154 = vmatpush1.msra.mxu0 0.0
          %2155 = vmatprep.subr.mxu0 0.0
          %2156 = vmatpush1.msra.mxu0 0.0
          %2157 = vmatprep.subr.mxu0 0.0
          %2158 = vmatpush1.msra.mxu0 0.0
          %2159 = vmatprep.subr.mxu0 0.0
          %2160 = vmatpush1.msra.mxu0 0.0
          %2161 = vmatprep.subr.mxu0 0.0
          %2162 = vmatpush1.msra.mxu0 0.0
          %2163 = vmatprep.subr.mxu0 0.0
          %2164 = vmatpush1.msra.mxu0 0.0
          %2165 = vmatprep.subr.mxu0 0.0
          %2166 = vmatpush1.msra.mxu0 0.0
          %2167 = vmatprep.subr.mxu0 0.0
          %2168 = vmatpush1.msra.mxu0 0.0
          %2169 = vmatprep.subr.mxu0 0.0
          %2170 = vmatpush1.msra.mxu0 0.0
          %2171 = vmatprep.subr.mxu0 0.0
          %2172 = vmatpush1.msra.mxu0 0.0
          %2173 = vmatprep.subr.mxu0 0.0
          %2174 = vmatpush1.msra.mxu0 0.0
          %2175 = vmatprep.subr.mxu0 0.0
          %2176 = vmatpush1.msra.mxu0 0.0
          %2177 = vmatprep.subr.mxu0 0.0
          %2178 = vmatpush1.msra.mxu0 0.0
          %2179 = vmatprep.subr.mxu0 0.0
          %2180 = vmatpush1.msra.mxu0 0.0
          %2181 = vmatprep.subr.mxu0 0.0
          %2182 = vmatpush1.msra.mxu0 0.0
          %2183 = vmatprep.subr.mxu0 0.0
          %2184 = vmatpush1.msra.mxu0 0.0
          %2185 = vmatprep.subr.mxu0 0.0
          %2186 = vmatpush1.msra.mxu0 0.0
          %2187 = vmatprep.subr.mxu0 0.0
          %2188 = vmatpush1.msra.mxu0 0.0
          %2189 = vmatprep.subr.mxu0 0.0
          %2190 = vmatpush1.msra.mxu0 0.0
          %2191 = vmatprep.subr.mxu0 0.0
          %2192 = vmatpush1.msra.mxu0 0.0
          %2193 = vmatprep.subr.mxu0 0.0
          %2194 = vmatpush1.msra.mxu0 0.0
          %2195 = vmatprep.subr.mxu0 0.0
          %2196 = vmatpush1.msra.mxu0 0.0
          %2197 = vmatprep.subr.mxu0 0.0
          %2198 = vmatpush1.msra.mxu0 0.0
          %2199 = vmatprep.mubr.f32.mxu0 0.0
          %2200 = vmatmul.mubr.f32.gmra.mrb[0].mxu0 %v2133
          %v2201 = vpop.f32.mrb[0].mxu0
          %v2202 = vadd.f32 %v2131, %v2201
          %v2203 = vpop.f32.mrb[0].mxu0
          %2204 = vdwg.mxu0
          %2205 = vst [vmem:[%s548] sm:$0xff] %v2202
        $region110: #{tpu_custom_call.1} parent=97 // pred_fallthru
          _
        %s2206 = smul.u32 16, %s40
        %p2207 = scmp.lt.s32.totalorder %s39, 1
        %s2208 = scalar_select %p2207, %s39, 1
        %p2209 = scmp.lt.s32.totalorder %s2206, 31
        %s2210 = scalar_select %p2209, %s2206, 31
        %s2211 = smul.addr %s2208, 32
        %s2212 = sadd.s32 %s2210, %s2211
        %s2213 = smul.addr %s2212, 8
        %s2214 = scalar_lea.vmem %s12, %s2213
        %s2215 = smul.u32 16, %s40
        %p2216 = scmp.lt.s32.totalorder %s39, 1
        %s2217 = scalar_select %p2216, %s39, 1
        %p2218 = scmp.lt.s32.totalorder %s2215, 31
        %s2219 = scalar_select %p2218, %s2215, 31
        %s2220 = smul.addr %s2217, 32
        %s2221 = sadd.s32 %s2219, %s2220
        %s2222 = smul.addr %s2221, 8
        %s2223 = scalar_lea.vmem %s13, %s2222
        %s2224 = sand.u32 %s354, 1
        %s2225 = scalar_lea.sflag [#allocation7], %s2224
        %s2226 = sand.u32 %s354, 1
        %s2227 = smul.addr %s2226, 8
        %s2228 = scalar_lea.vmem [#allocation6], %s2227
        // Predicated region
        $region111: #{tpu_custom_call.1} parent=97 // pred_check
          %p2229 = pneg %p310
        $region112: #{tpu_custom_call.1} parent=97 // pred_check_branch
          %2231 = sbr.rel (%p2229) target = $region114
        $region113: #{tpu_custom_call.1} parent=97 // pred_region
          %s2232 = smul.u32 16, %s40
        $region114: #{tpu_custom_call.1} parent=97 // pred_fallthru
          _
        // Predicated region
        $region115: #{tpu_custom_call.1} parent=97 // pred_check
          %p2233 = pneg %p338
        $region116: #{tpu_custom_call.1} parent=97 // pred_check_branch
          %2235 = sbr.rel (%p2233) target = $region118
        $region117: #{tpu_custom_call.1} parent=97 // pred_region
          %s2236 = smul.u32 16, %s40
        $region118: #{tpu_custom_call.1} parent=97 // pred_fallthru
          _
        // Predicated region
        $region119: #{tpu_custom_call.1} parent=97 // pred_check
          %p2237 = pneg %p364
        $region120: #{tpu_custom_call.1} parent=97 // pred_check_branch
          %2239 = sbr.rel (%p2237) target = $region122
        $region121: #{tpu_custom_call.1} parent=97 // pred_region
          %s2241 = ssub.s32 128, 128
          %2242 = vsyncadd %s2225, %s2241
          %s2243 = smul.addr %s39, 128
          %s2244 = scalar_lea.hbm %s14, %s2243
          %s2246 = sshll.u32 %s2228, 4
          %s2247 = int_to_ptr.vmem [resolvable:$true] %s2246
          %2249 = dma.vmem_to_hbm [thread:$0]  %s2247, 128, %s2244, %s2225
        $region122: #{tpu_custom_call.1} parent=97 // pred_fallthru
          _
      $region98: #{tpu_custom_call.1} parent=5 // pred_fallthru
        _
      %p2250 = scmp.le.s32.totalorder 2, %s30
      // Predicated region
      $region123: #{tpu_custom_call.1} parent=5 // pred_check
        %p2251 = pneg %p2250
      $region124: #{tpu_custom_call.1} parent=5 // pred_check_branch
        %2253 = sbr.rel (%p2251) target = $region126
      $region125: #{tpu_custom_call.1} parent=5 // pred_region
        %s2254 = ssub.s32 %s30, 2
        // Predicated region
        $region127: #{tpu_custom_call.1} parent=125 // pred_check
          %p2255 = pneg %p316
        $region128: #{tpu_custom_call.1} parent=125 // pred_check_branch
          %2257 = sbr.rel (%p2255) target = $region130
        $region129: #{tpu_custom_call.1} parent=125 // pred_region
          %s2258 = smul.u32 16, %s42
          %p2259 = scmp.lt.s32.totalorder %s41, 1
          %s2260 = scalar_select %p2259, %s41, 1
          %p2261 = scmp.lt.s32.totalorder %s2258, 31
          %s2262 = scalar_select %p2261, %s2258, 31
          %s2263 = smul.addr %s2260, 32
          %s2264 = sadd.s32 %s2262, %s2263
          %s2265 = smul.addr %s2264, 8
          %s2266 = scalar_lea.vmem %s12, %s2265
        $region130: #{tpu_custom_call.1} parent=125 // pred_fallthru
          _
        // Predicated region
        $region131: #{tpu_custom_call.1} parent=125 // pred_check
          %p2267 = pneg %p344
        $region132: #{tpu_custom_call.1} parent=125 // pred_check_branch
          %2269 = sbr.rel (%p2267) target = $region134
        $region133: #{tpu_custom_call.1} parent=125 // pred_region
          %s2270 = smul.u32 16, %s42
          %p2271 = scmp.lt.s32.totalorder %s41, 1
          %s2272 = scalar_select %p2271, %s41, 1
          %p2273 = scmp.lt.s32.totalorder %s2270, 31
          %s2274 = scalar_select %p2273, %s2270, 31
          %s2275 = smul.addr %s2272, 32
          %s2276 = sadd.s32 %s2274, %s2275
          %s2277 = smul.addr %s2276, 8
          %s2278 = scalar_lea.vmem %s13, %s2277
        $region134: #{tpu_custom_call.1} parent=125 // pred_fallthru
          _
        // Predicated region
        $region135: #{tpu_custom_call.1} parent=125 // pred_check
          %p2279 = pneg %p370
        $region136: #{tpu_custom_call.1} parent=125 // pred_check_branch
          %2281 = sbr.rel (%p2279) target = $region138
        $region137: #{tpu_custom_call.1} parent=125 // pred_region
          %s2282 = sand.u32 %s355, 1
          %s2283 = scalar_lea.sflag [#allocation7], %s2282
          %s2284 = sand.u32 %s355, 1
          %s2285 = smul.addr %s2284, 8
          %s2286 = scalar_lea.vmem [#allocation6], %s2285
          %2287 = dma.done %s2283, 128
        $region138: #{tpu_custom_call.1} parent=125 // pred_fallthru
          _
      $region126: #{tpu_custom_call.1} parent=5 // pred_fallthru
        _
    $region6: #{tpu_custom_call.1} parent=1 // loop_footer
      %s34 = sadd.s32 1, %s30
    $region7: #{tpu_custom_call.1} parent=1 // loop_footer_branch
      %29 = sbr.rel target = $region3
    $region8: #{tpu_custom_call.1} parent=1 // loop_exit
      _
    %2288 = vsyncpa [#allocation7], 1
    %s2289 = scalar_lea.sflag [#allocation7], 1
    %2290 = vsyncpa %s2289, 1

</llo_original>
